<compile_context>
chip_gen: v7x
topology: tpu7x:2x2x1
jax: 0.10.0
libtpu: 0.0.40
codegen_flags: <defaults>
</compile_context>

<pallas_src>
import jax
import jax.numpy as jnp
from jax.experimental import pallas as pl
from jax.experimental.pallas import tpu as pltpu

# ---- small synthetic hyper-parameters (consistent with the module) ----------
VOCAB = 50            # input_size
HIDDEN = 32           # hidden_size (conv kernel width == HIDDEN)
NUM_CLASSES = 8       # output_size
SEQ_LEN = 12          # token sequence length
BATCH = 2
N_FILT = 10           # conv1 out channels
KH = 5                # conv1 kernel height
T_OUT = SEQ_LEN - KH + 1       # conv output height = 8
POOLED = T_OUT // 2            # MaxPool2d(2) along seq = 4
FC_IN = N_FILT * POOLED        # flattened features = 40
K_IM2COL = KH * HIDDEN         # im2col contraction dim = 160
N_ROWS = BATCH * T_OUT         # 16 im2col rows
HALF = POOLED * BATCH          # 8 pooled rows
# TODO(synk): the original module hard-codes nn.Linear(11570, ...) and applies
# MaxPool2d(2) to a width-1 conv output (which PyTorch rejects).  Here the fc
# in-features are derived from the actual shapes (40) and pooling is applied
# over the seq dim only (width stays 1), matching the 10*1157*1 = 11570
# factorization the original shapes imply.


def textcnn_kernel(ids_ref, emb_ref, cw_ref, cb_ref, fw_ref, fb_ref, out_ref,
                   patch_ref):
    # --- fused embedding gather + im2col -------------------------------------
    # Patch rows are ordered [parity, pooled_pos, batch] so maxpool(2) over seq
    # is one vectorized max of two vreg-aligned 8-row halves.  Each distinct
    # (b, t) embedding row is gathered ONCE (dynamic sublane-offset load) and
    # written to every (<= KH) patch window that consumes it.
    for b in range(BATCH):
        for t in range(SEQ_LEN):
            row = emb_ref[pl.ds(ids_ref[b, t], 1), :]            # (1, HIDDEN)
            for k in range(KH):
                t0 = t - k                                       # conv window start
                if 0 <= t0 < T_OUT:
                    parity, p = t0 % 2, t0 // 2
                    r = parity * HALF + p * BATCH + b
                    patch_ref[r:r + 1, k * HIDDEN:(k + 1) * HIDDEN] = row

    # --- conv1 as a single im2col matmul: (16, 160) @ (160, 10) -> (16, 10) --
    conv = jnp.dot(patch_ref[...], cw_ref[...],
                   preferred_element_type=jnp.float32)

    # --- maxpool(2) over seq = max of the two parity halves; + bias, relu ----
    # (bias after the max is equivalent: it is constant within each pair)
    pooled = jnp.maximum(conv[0:HALF, :], conv[HALF:, :])        # (8, N_FILT)
    pooled = jnp.maximum(pooled + cb_ref[...], 0.0)

    # --- fc as 4 accumulating sub-matmuls (no feats lane-scatter / scratch) --
    # logits[b, c] = sum_p pooled[p*B + b, :] @ fw[p*F:(p+1)*F, c]
    acc = jnp.zeros((BATCH, NUM_CLASSES), jnp.float32)
    for p in range(POOLED):
        acc = acc + jnp.dot(pooled[p * BATCH:(p + 1) * BATCH, :],
                            fw_ref[p * N_FILT:(p + 1) * N_FILT, :],
                            preferred_element_type=jnp.float32)
    logits = acc + fb_ref[...]                                   # (2, 8)

    # --- log_softmax over classes (lane axis) --------------------------------
    m = jnp.max(logits, axis=-1, keepdims=True)
    s = logits - m
    lse = jnp.log(jnp.sum(jnp.exp(s), axis=-1, keepdims=True))
    out_ref[...] = s - lse                                       # single store


_COST = pl.CostEstimate(
    flops=2 * N_ROWS * K_IM2COL * N_FILT + 2 * BATCH * FC_IN * NUM_CLASSES,
    transcendentals=BATCH * NUM_CLASSES + BATCH,
    bytes_accessed=(BATCH * SEQ_LEN * 4 + VOCAB * HIDDEN * 4
                    + K_IM2COL * N_FILT * 4 + N_FILT * 4
                    + FC_IN * NUM_CLASSES * 4 + NUM_CLASSES * 4
                    + BATCH * NUM_CLASSES * 4),
)


def _prep_params(params):
    """Kernel-friendly weight layouts (pure layout plumbing, jitted once)."""
    cw_k = params["conv_w"].reshape(N_FILT, K_IM2COL).T.astype(jnp.float32)  # (160,10)
    cb_k = params["conv_b"].reshape(1, N_FILT).astype(jnp.float32)
    # PyTorch x.view(B,-1) flattens (channel, pooled_pos); kernel pooled rows
    # are (pooled_pos, batch), so permute the fc weight to (p, f)-major.
    fw_k = params["fc_w"].reshape(NUM_CLASSES, N_FILT, POOLED)               # (c,f,p)
    fw_k = jnp.transpose(fw_k, (2, 1, 0)).reshape(FC_IN, NUM_CLASSES)        # (p,f)-major
    fw_k = fw_k.astype(jnp.float32)
    fb_k = params["fc_b"].reshape(1, NUM_CLASSES).astype(jnp.float32)
    return cw_k, cb_k, fw_k, fb_k


def textcnn_forward(input_ids, seq_lengths, labels, params):
    # seq_lengths / labels are unused by the reference forward (signature parity).
    del seq_lengths, labels
    cw_k, cb_k, fw_k, fb_k = _prep_params(params)
    emb = params["emb"].astype(jnp.float32)                      # (VOCAB, HIDDEN)

    out = pl.pallas_call(
        textcnn_kernel,
        out_shape=jax.ShapeDtypeStruct((BATCH, NUM_CLASSES), jnp.float32),
        in_specs=[
            pl.BlockSpec(memory_space=pltpu.MemorySpace.SMEM),   # input_ids (2,12) i32
            pl.BlockSpec(memory_space=pltpu.MemorySpace.VMEM),   # emb table (50,32)
            pl.BlockSpec(memory_space=pltpu.MemorySpace.VMEM),   # conv w    (160,10)
            pl.BlockSpec(memory_space=pltpu.MemorySpace.VMEM),   # conv b    (1,10)
            pl.BlockSpec(memory_space=pltpu.MemorySpace.VMEM),   # fc w      (40,8)
            pl.BlockSpec(memory_space=pltpu.MemorySpace.VMEM),   # fc b      (1,8)
        ],
        out_specs=pl.BlockSpec(memory_space=pltpu.MemorySpace.VMEM),
        scratch_shapes=[
            pltpu.VMEM((N_ROWS, K_IM2COL), jnp.float32),         # im2col patches (16,160)
        ],
        cost_estimate=_COST,
        # TODO(synk): at production sizes (fc in-features 11570, larger B/L),
        # add a row-tiled grid with dimension_semantics=("parallel",) for
        # v7x's 2 TensorCores, re-derive VMEM residency against 64 MiB, cast
        # matmul operands to bf16, and pad output lanes to a multiple of 128.
    )(input_ids.astype(jnp.int32), emb, cw_k, cb_k, fw_k, fb_k)
    return out, 0.0


def ref_forward(input_ids, params):
    """Pure-JAX reference mirroring the PyTorch forward."""
    emb = params["emb"][input_ids]                                 # (B, L, H)
    W = params["conv_w"].reshape(N_FILT, KH * HIDDEN)              # (10, 5H)
    patches = jnp.stack(
        [emb[:, t:t + KH, :].reshape(BATCH, KH * HIDDEN) for t in range(T_OUT)],
        axis=1)                                                    # (B, T_OUT, 5H)
    conv = jnp.einsum("btk,ck->bct", patches, W) + params["conv_b"][None, :, None]
    pooled = jnp.max(conv.reshape(BATCH, N_FILT, POOLED, 2), axis=-1)
    x = jnp.maximum(pooled, 0.0).reshape(BATCH, -1)                # channel-major flatten
    logits = x @ params["fc_w"].T + params["fc_b"]
    return jax.nn.log_softmax(logits, axis=1)


if __name__ == "__main__":
    key = jax.random.PRNGKey(0)
    k_emb, k_cw, k_cb, k_fw, k_fb, k_in = jax.random.split(key, 6)
    params = {
        "emb":    jax.random.normal(k_emb, (VOCAB, HIDDEN), jnp.float32) * 0.1,
        "conv_w": jax.random.normal(k_cw, (N_FILT, 1, KH, HIDDEN), jnp.float32) * 0.1,
        "conv_b": jax.random.normal(k_cb, (N_FILT,), jnp.float32) * 0.1,
        "fc_w":   jax.random.normal(k_fw, (NUM_CLASSES, FC_IN), jnp.float32) * 0.1,
        "fc_b":   jax.random.normal(k_fb, (NUM_CLASSES,), jnp.float32) * 0.1,
    }
    input_ids = jax.random.randint(k_in, (BATCH, SEQ_LEN), 0, VOCAB, jnp.int32)
    seq_lengths = jnp.full((BATCH,), SEQ_LEN, jnp.int32)
    labels = jnp.zeros((BATCH,), jnp.int32)

    fwd = jax.jit(textcnn_forward)
    log_probs, aux = fwd(input_ids, seq_lengths, labels, params)
    log_probs = jax.block_until_ready(log_probs)

    ref = ref_forward(input_ids, params)
    assert log_probs.shape == (BATCH, NUM_CLASSES)
    assert float(aux) == 0.0
    assert jnp.allclose(log_probs, ref, atol=1e-4, rtol=1e-4)
    print("KERNEL_OK")
</pallas_src>

<mosaic_0001>
module attributes {stable_mosaic.version = 11 : i64} {
  func.func @textcnn_kernel(%arg0: memref<2x12xi32, #tpu.memory_space<smem>>, %arg1: memref<50x32xf32, #tpu.memory_space<vmem>>, %arg2: memref<160x10xf32, #tpu.memory_space<vmem>>, %arg3: memref<1x10xf32, #tpu.memory_space<vmem>>, %arg4: memref<40x8xf32, #tpu.memory_space<vmem>>, %arg5: memref<1x8xf32, #tpu.memory_space<vmem>>, %arg6: memref<2x8xf32, #tpu.memory_space<vmem>>, %arg7: memref<16x160xf32, #tpu.memory_space<vmem>>) attributes {dimension_semantics = [], scalar_prefetch = 0 : i64, scratch_operands = 1 : i64, tpu.core_type = #tpu.core_type<tc>} {
    %c0 = arith.constant 0 : index
    %c0_0 = arith.constant 0 : index
    %0 = memref.load %arg0[%c0, %c0_0] : memref<2x12xi32, #tpu.memory_space<smem>>
    %1 = arith.index_cast %0 : i32 to index
    %c0_1 = arith.constant 0 : index
    %2 = vector.load %arg1[%1, %c0_1] : memref<50x32xf32, #tpu.memory_space<vmem>>, vector<1x32xf32>
    %c0_2 = arith.constant 0 : index
    %c0_3 = arith.constant 0 : index
    %3 = vector.load %arg7[%c0_2, %c0_3] : memref<16x160xf32, #tpu.memory_space<vmem>>, vector<1x32xf32>
    tpu.vector_store %arg7[%c0_2, %c0_3], %2 {strides = array<i32>} : memref<16x160xf32, #tpu.memory_space<vmem>>, vector<1x32xf32>,
    %c0_4 = arith.constant 0 : index
    %c1 = arith.constant 1 : index
    %4 = memref.load %arg0[%c0_4, %c1] : memref<2x12xi32, #tpu.memory_space<smem>>
    %5 = arith.index_cast %4 : i32 to index
    %c0_5 = arith.constant 0 : index
    %6 = vector.load %arg1[%5, %c0_5] : memref<50x32xf32, #tpu.memory_space<vmem>>, vector<1x32xf32>
    %c8 = arith.constant 8 : index
    %c0_6 = arith.constant 0 : index
    %7 = vector.load %arg7[%c8, %c0_6] : memref<16x160xf32, #tpu.memory_space<vmem>>, vector<1x32xf32>
    tpu.vector_store %arg7[%c8, %c0_6], %6 {strides = array<i32>} : memref<16x160xf32, #tpu.memory_space<vmem>>, vector<1x32xf32>,
    %c0_7 = arith.constant 0 : index
    %c32 = arith.constant 32 : index
    %8 = vector.load %arg7[%c0_7, %c32] : memref<16x160xf32, #tpu.memory_space<vmem>>, vector<1x32xf32>
    tpu.vector_store %arg7[%c0_7, %c32], %6 {strides = array<i32>} : memref<16x160xf32, #tpu.memory_space<vmem>>, vector<1x32xf32>,
    %c0_8 = arith.constant 0 : index
    %c2 = arith.constant 2 : index
    %9 = memref.load %arg0[%c0_8, %c2] : memref<2x12xi32, #tpu.memory_space<smem>>
    %10 = arith.index_cast %9 : i32 to index
    %c0_9 = arith.constant 0 : index
    %11 = vector.load %arg1[%10, %c0_9] : memref<50x32xf32, #tpu.memory_space<vmem>>, vector<1x32xf32>
    %c2_10 = arith.constant 2 : index
    %c0_11 = arith.constant 0 : index
    %12 = vector.load %arg7[%c2_10, %c0_11] : memref<16x160xf32, #tpu.memory_space<vmem>>, vector<1x32xf32>
    tpu.vector_store %arg7[%c2_10, %c0_11], %11 {strides = array<i32>} : memref<16x160xf32, #tpu.memory_space<vmem>>, vector<1x32xf32>,
    %c8_12 = arith.constant 8 : index
    %c32_13 = arith.constant 32 : index
    %13 = vector.load %arg7[%c8_12, %c32_13] : memref<16x160xf32, #tpu.memory_space<vmem>>, vector<1x32xf32>
    tpu.vector_store %arg7[%c8_12, %c32_13], %11 {strides = array<i32>} : memref<16x160xf32, #tpu.memory_space<vmem>>, vector<1x32xf32>,
    %c0_14 = arith.constant 0 : index
    %c64 = arith.constant 64 : index
    %14 = vector.load %arg7[%c0_14, %c64] : memref<16x160xf32, #tpu.memory_space<vmem>>, vector<1x32xf32>
    tpu.vector_store %arg7[%c0_14, %c64], %11 {strides = array<i32>} : memref<16x160xf32, #tpu.memory_space<vmem>>, vector<1x32xf32>,
    %c0_15 = arith.constant 0 : index
    %c3 = arith.constant 3 : index
    %15 = memref.load %arg0[%c0_15, %c3] : memref<2x12xi32, #tpu.memory_space<smem>>
    %16 = arith.index_cast %15 : i32 to index
    %c0_16 = arith.constant 0 : index
    %17 = vector.load %arg1[%16, %c0_16] : memref<50x32xf32, #tpu.memory_space<vmem>>, vector<1x32xf32>
    %c10 = arith.constant 10 : index
    %c0_17 = arith.constant 0 : index
    %18 = vector.load %arg7[%c10, %c0_17] : memref<16x160xf32, #tpu.memory_space<vmem>>, vector<1x32xf32>
    tpu.vector_store %arg7[%c10, %c0_17], %17 {strides = array<i32>} : memref<16x160xf32, #tpu.memory_space<vmem>>, vector<1x32xf32>,
    %c2_18 = arith.constant 2 : index
    %c32_19 = arith.constant 32 : index
    %19 = vector.load %arg7[%c2_18, %c32_19] : memref<16x160xf32, #tpu.memory_space<vmem>>, vector<1x32xf32>
    tpu.vector_store %arg7[%c2_18, %c32_19], %17 {strides = array<i32>} : memref<16x160xf32, #tpu.memory_space<vmem>>, vector<1x32xf32>,
    %c8_20 = arith.constant 8 : index
    %c64_21 = arith.constant 64 : index
    %20 = vector.load %arg7[%c8_20, %c64_21] : memref<16x160xf32, #tpu.memory_space<vmem>>, vector<1x32xf32>
    tpu.vector_store %arg7[%c8_20, %c64_21], %17 {strides = array<i32>} : memref<16x160xf32, #tpu.memory_space<vmem>>, vector<1x32xf32>,
    %c0_22 = arith.constant 0 : index
    %c96 = arith.constant 96 : index
    %21 = vector.load %arg7[%c0_22, %c96] : memref<16x160xf32, #tpu.memory_space<vmem>>, vector<1x32xf32>
    tpu.vector_store %arg7[%c0_22, %c96], %17 {strides = array<i32>} : memref<16x160xf32, #tpu.memory_space<vmem>>, vector<1x32xf32>,
    %c0_23 = arith.constant 0 : index
    %c4 = arith.constant 4 : index
    %22 = memref.load %arg0[%c0_23, %c4] : memref<2x12xi32, #tpu.memory_space<smem>>
    %23 = arith.index_cast %22 : i32 to index
    %c0_24 = arith.constant 0 : index
    %24 = vector.load %arg1[%23, %c0_24] : memref<50x32xf32, #tpu.memory_space<vmem>>, vector<1x32xf32>
    %c4_25 = arith.constant 4 : index
    %c0_26 = arith.constant 0 : index
    %25 = vector.load %arg7[%c4_25, %c0_26] : memref<16x160xf32, #tpu.memory_space<vmem>>, vector<1x32xf32>
    tpu.vector_store %arg7[%c4_25, %c0_26], %24 {strides = array<i32>} : memref<16x160xf32, #tpu.memory_space<vmem>>, vector<1x32xf32>,
    %c10_27 = arith.constant 10 : index
    %c32_28 = arith.constant 32 : index
    %26 = vector.load %arg7[%c10_27, %c32_28] : memref<16x160xf32, #tpu.memory_space<vmem>>, vector<1x32xf32>
    tpu.vector_store %arg7[%c10_27, %c32_28], %24 {strides = array<i32>} : memref<16x160xf32, #tpu.memory_space<vmem>>, vector<1x32xf32>,
    %c2_29 = arith.constant 2 : index
    %c64_30 = arith.constant 64 : index
    %27 = vector.load %arg7[%c2_29, %c64_30] : memref<16x160xf32, #tpu.memory_space<vmem>>, vector<1x32xf32>
    tpu.vector_store %arg7[%c2_29, %c64_30], %24 {strides = array<i32>} : memref<16x160xf32, #tpu.memory_space<vmem>>, vector<1x32xf32>,
    %c8_31 = arith.constant 8 : index
    %c96_32 = arith.constant 96 : index
    %28 = vector.load %arg7[%c8_31, %c96_32] : memref<16x160xf32, #tpu.memory_space<vmem>>, vector<1x32xf32>
    tpu.vector_store %arg7[%c8_31, %c96_32], %24 {strides = array<i32>} : memref<16x160xf32, #tpu.memory_space<vmem>>, vector<1x32xf32>,
    %c0_33 = arith.constant 0 : index
    %c128 = arith.constant 128 : index
    %29 = vector.load %arg7[%c0_33, %c128] : memref<16x160xf32, #tpu.memory_space<vmem>>, vector<1x32xf32>
    tpu.vector_store %arg7[%c0_33, %c128], %24 {strides = array<i32>} : memref<16x160xf32, #tpu.memory_space<vmem>>, vector<1x32xf32>,
    %c0_34 = arith.constant 0 : index
    %c5 = arith.constant 5 : index
    %30 = memref.load %arg0[%c0_34, %c5] : memref<2x12xi32, #tpu.memory_space<smem>>
    %31 = arith.index_cast %30 : i32 to index
    %c0_35 = arith.constant 0 : index
    %32 = vector.load %arg1[%31, %c0_35] : memref<50x32xf32, #tpu.memory_space<vmem>>, vector<1x32xf32>
    %c12 = arith.constant 12 : index
    %c0_36 = arith.constant 0 : index
    %33 = vector.load %arg7[%c12, %c0_36] : memref<16x160xf32, #tpu.memory_space<vmem>>, vector<1x32xf32>
    tpu.vector_store %arg7[%c12, %c0_36], %32 {strides = array<i32>} : memref<16x160xf32, #tpu.memory_space<vmem>>, vector<1x32xf32>,
    %c4_37 = arith.constant 4 : index
    %c32_38 = arith.constant 32 : index
    %34 = vector.load %arg7[%c4_37, %c32_38] : memref<16x160xf32, #tpu.memory_space<vmem>>, vector<1x32xf32>
    tpu.vector_store %arg7[%c4_37, %c32_38], %32 {strides = array<i32>} : memref<16x160xf32, #tpu.memory_space<vmem>>, vector<1x32xf32>,
    %c10_39 = arith.constant 10 : index
    %c64_40 = arith.constant 64 : index
    %35 = vector.load %arg7[%c10_39, %c64_40] : memref<16x160xf32, #tpu.memory_space<vmem>>, vector<1x32xf32>
    tpu.vector_store %arg7[%c10_39, %c64_40], %32 {strides = array<i32>} : memref<16x160xf32, #tpu.memory_space<vmem>>, vector<1x32xf32>,
    %c2_41 = arith.constant 2 : index
    %c96_42 = arith.constant 96 : index
    %36 = vector.load %arg7[%c2_41, %c96_42] : memref<16x160xf32, #tpu.memory_space<vmem>>, vector<1x32xf32>
    tpu.vector_store %arg7[%c2_41, %c96_42], %32 {strides = array<i32>} : memref<16x160xf32, #tpu.memory_space<vmem>>, vector<1x32xf32>,
    %c8_43 = arith.constant 8 : index
    %c128_44 = arith.constant 128 : index
    %37 = vector.load %arg7[%c8_43, %c128_44] : memref<16x160xf32, #tpu.memory_space<vmem>>, vector<1x32xf32>
    tpu.vector_store %arg7[%c8_43, %c128_44], %32 {strides = array<i32>} : memref<16x160xf32, #tpu.memory_space<vmem>>, vector<1x32xf32>,
    %c0_45 = arith.constant 0 : index
    %c6 = arith.constant 6 : index
    %38 = memref.load %arg0[%c0_45, %c6] : memref<2x12xi32, #tpu.memory_space<smem>>
    %39 = arith.index_cast %38 : i32 to index
    %c0_46 = arith.constant 0 : index
    %40 = vector.load %arg1[%39, %c0_46] : memref<50x32xf32, #tpu.memory_space<vmem>>, vector<1x32xf32>
    %c6_47 = arith.constant 6 : index
    %c0_48 = arith.constant 0 : index
    %41 = vector.load %arg7[%c6_47, %c0_48] : memref<16x160xf32, #tpu.memory_space<vmem>>, vector<1x32xf32>
    tpu.vector_store %arg7[%c6_47, %c0_48], %40 {strides = array<i32>} : memref<16x160xf32, #tpu.memory_space<vmem>>, vector<1x32xf32>,
    %c12_49 = arith.constant 12 : index
    %c32_50 = arith.constant 32 : index
    %42 = vector.load %arg7[%c12_49, %c32_50] : memref<16x160xf32, #tpu.memory_space<vmem>>, vector<1x32xf32>
    tpu.vector_store %arg7[%c12_49, %c32_50], %40 {strides = array<i32>} : memref<16x160xf32, #tpu.memory_space<vmem>>, vector<1x32xf32>,
    %c4_51 = arith.constant 4 : index
    %c64_52 = arith.constant 64 : index
    %43 = vector.load %arg7[%c4_51, %c64_52] : memref<16x160xf32, #tpu.memory_space<vmem>>, vector<1x32xf32>
    tpu.vector_store %arg7[%c4_51, %c64_52], %40 {strides = array<i32>} : memref<16x160xf32, #tpu.memory_space<vmem>>, vector<1x32xf32>,
    %c10_53 = arith.constant 10 : index
    %c96_54 = arith.constant 96 : index
    %44 = vector.load %arg7[%c10_53, %c96_54] : memref<16x160xf32, #tpu.memory_space<vmem>>, vector<1x32xf32>
    tpu.vector_store %arg7[%c10_53, %c96_54], %40 {strides = array<i32>} : memref<16x160xf32, #tpu.memory_space<vmem>>, vector<1x32xf32>,
    %c2_55 = arith.constant 2 : index
    %c128_56 = arith.constant 128 : index
    %45 = vector.load %arg7[%c2_55, %c128_56] : memref<16x160xf32, #tpu.memory_space<vmem>>, vector<1x32xf32>
    tpu.vector_store %arg7[%c2_55, %c128_56], %40 {strides = array<i32>} : memref<16x160xf32, #tpu.memory_space<vmem>>, vector<1x32xf32>,
    %c0_57 = arith.constant 0 : index
    %c7 = arith.constant 7 : index
    %46 = memref.load %arg0[%c0_57, %c7] : memref<2x12xi32, #tpu.memory_space<smem>>
    %47 = arith.index_cast %46 : i32 to index
    %c0_58 = arith.constant 0 : index
    %48 = vector.load %arg1[%47, %c0_58] : memref<50x32xf32, #tpu.memory_space<vmem>>, vector<1x32xf32>
    %c14 = arith.constant 14 : index
    %c0_59 = arith.constant 0 : index
    %49 = vector.load %arg7[%c14, %c0_59] : memref<16x160xf32, #tpu.memory_space<vmem>>, vector<1x32xf32>
    tpu.vector_store %arg7[%c14, %c0_59], %48 {strides = array<i32>} : memref<16x160xf32, #tpu.memory_space<vmem>>, vector<1x32xf32>,
    %c6_60 = arith.constant 6 : index
    %c32_61 = arith.constant 32 : index
    %50 = vector.load %arg7[%c6_60, %c32_61] : memref<16x160xf32, #tpu.memory_space<vmem>>, vector<1x32xf32>
    tpu.vector_store %arg7[%c6_60, %c32_61], %48 {strides = array<i32>} : memref<16x160xf32, #tpu.memory_space<vmem>>, vector<1x32xf32>,
    %c12_62 = arith.constant 12 : index
    %c64_63 = arith.constant 64 : index
    %51 = vector.load %arg7[%c12_62, %c64_63] : memref<16x160xf32, #tpu.memory_space<vmem>>, vector<1x32xf32>
    tpu.vector_store %arg7[%c12_62, %c64_63], %48 {strides = array<i32>} : memref<16x160xf32, #tpu.memory_space<vmem>>, vector<1x32xf32>,
    %c4_64 = arith.constant 4 : index
    %c96_65 = arith.constant 96 : index
    %52 = vector.load %arg7[%c4_64, %c96_65] : memref<16x160xf32, #tpu.memory_space<vmem>>, vector<1x32xf32>
    tpu.vector_store %arg7[%c4_64, %c96_65], %48 {strides = array<i32>} : memref<16x160xf32, #tpu.memory_space<vmem>>, vector<1x32xf32>,
    %c10_66 = arith.constant 10 : index
    %c128_67 = arith.constant 128 : index
    %53 = vector.load %arg7[%c10_66, %c128_67] : memref<16x160xf32, #tpu.memory_space<vmem>>, vector<1x32xf32>
    tpu.vector_store %arg7[%c10_66, %c128_67], %48 {strides = array<i32>} : memref<16x160xf32, #tpu.memory_space<vmem>>, vector<1x32xf32>,
    %c0_68 = arith.constant 0 : index
    %c8_69 = arith.constant 8 : index
    %54 = memref.load %arg0[%c0_68, %c8_69] : memref<2x12xi32, #tpu.memory_space<smem>>
    %55 = arith.index_cast %54 : i32 to index
    %c0_70 = arith.constant 0 : index
    %56 = vector.load %arg1[%55, %c0_70] : memref<50x32xf32, #tpu.memory_space<vmem>>, vector<1x32xf32>
    %c14_71 = arith.constant 14 : index
    %c32_72 = arith.constant 32 : index
    %57 = vector.load %arg7[%c14_71, %c32_72] : memref<16x160xf32, #tpu.memory_space<vmem>>, vector<1x32xf32>
    tpu.vector_store %arg7[%c14_71, %c32_72], %56 {strides = array<i32>} : memref<16x160xf32, #tpu.memory_space<vmem>>, vector<1x32xf32>,
    %c6_73 = arith.constant 6 : index
    %c64_74 = arith.constant 64 : index
    %58 = vector.load %arg7[%c6_73, %c64_74] : memref<16x160xf32, #tpu.memory_space<vmem>>, vector<1x32xf32>
    tpu.vector_store %arg7[%c6_73, %c64_74], %56 {strides = array<i32>} : memref<16x160xf32, #tpu.memory_space<vmem>>, vector<1x32xf32>,
    %c12_75 = arith.constant 12 : index
    %c96_76 = arith.constant 96 : index
    %59 = vector.load %arg7[%c12_75, %c96_76] : memref<16x160xf32, #tpu.memory_space<vmem>>, vector<1x32xf32>
    tpu.vector_store %arg7[%c12_75, %c96_76], %56 {strides = array<i32>} : memref<16x160xf32, #tpu.memory_space<vmem>>, vector<1x32xf32>,
    %c4_77 = arith.constant 4 : index
    %c128_78 = arith.constant 128 : index
    %60 = vector.load %arg7[%c4_77, %c128_78] : memref<16x160xf32, #tpu.memory_space<vmem>>, vector<1x32xf32>
    tpu.vector_store %arg7[%c4_77, %c128_78], %56 {strides = array<i32>} : memref<16x160xf32, #tpu.memory_space<vmem>>, vector<1x32xf32>,
    %c0_79 = arith.constant 0 : index
    %c9 = arith.constant 9 : index
    %61 = memref.load %arg0[%c0_79, %c9] : memref<2x12xi32, #tpu.memory_space<smem>>
    %62 = arith.index_cast %61 : i32 to index
    %c0_80 = arith.constant 0 : index
    %63 = vector.load %arg1[%62, %c0_80] : memref<50x32xf32, #tpu.memory_space<vmem>>, vector<1x32xf32>
    %c14_81 = arith.constant 14 : index
    %c64_82 = arith.constant 64 : index
    %64 = vector.load %arg7[%c14_81, %c64_82] : memref<16x160xf32, #tpu.memory_space<vmem>>, vector<1x32xf32>
    tpu.vector_store %arg7[%c14_81, %c64_82], %63 {strides = array<i32>} : memref<16x160xf32, #tpu.memory_space<vmem>>, vector<1x32xf32>,
    %c6_83 = arith.constant 6 : index
    %c96_84 = arith.constant 96 : index
    %65 = vector.load %arg7[%c6_83, %c96_84] : memref<16x160xf32, #tpu.memory_space<vmem>>, vector<1x32xf32>
    tpu.vector_store %arg7[%c6_83, %c96_84], %63 {strides = array<i32>} : memref<16x160xf32, #tpu.memory_space<vmem>>, vector<1x32xf32>,
    %c12_85 = arith.constant 12 : index
    %c128_86 = arith.constant 128 : index
    %66 = vector.load %arg7[%c12_85, %c128_86] : memref<16x160xf32, #tpu.memory_space<vmem>>, vector<1x32xf32>
    tpu.vector_store %arg7[%c12_85, %c128_86], %63 {strides = array<i32>} : memref<16x160xf32, #tpu.memory_space<vmem>>, vector<1x32xf32>,
    %c0_87 = arith.constant 0 : index
    %c10_88 = arith.constant 10 : index
    %67 = memref.load %arg0[%c0_87, %c10_88] : memref<2x12xi32, #tpu.memory_space<smem>>
    %68 = arith.index_cast %67 : i32 to index
    %c0_89 = arith.constant 0 : index
    %69 = vector.load %arg1[%68, %c0_89] : memref<50x32xf32, #tpu.memory_space<vmem>>, vector<1x32xf32>
    %c14_90 = arith.constant 14 : index
    %c96_91 = arith.constant 96 : index
    %70 = vector.load %arg7[%c14_90, %c96_91] : memref<16x160xf32, #tpu.memory_space<vmem>>, vector<1x32xf32>
    tpu.vector_store %arg7[%c14_90, %c96_91], %69 {strides = array<i32>} : memref<16x160xf32, #tpu.memory_space<vmem>>, vector<1x32xf32>,
    %c6_92 = arith.constant 6 : index
    %c128_93 = arith.constant 128 : index
    %71 = vector.load %arg7[%c6_92, %c128_93] : memref<16x160xf32, #tpu.memory_space<vmem>>, vector<1x32xf32>
    tpu.vector_store %arg7[%c6_92, %c128_93], %69 {strides = array<i32>} : memref<16x160xf32, #tpu.memory_space<vmem>>, vector<1x32xf32>,
    %c0_94 = arith.constant 0 : index
    %c11 = arith.constant 11 : index
    %72 = memref.load %arg0[%c0_94, %c11] : memref<2x12xi32, #tpu.memory_space<smem>>
    %73 = arith.index_cast %72 : i32 to index
    %c0_95 = arith.constant 0 : index
    %74 = vector.load %arg1[%73, %c0_95] : memref<50x32xf32, #tpu.memory_space<vmem>>, vector<1x32xf32>
    %c14_96 = arith.constant 14 : index
    %c128_97 = arith.constant 128 : index
    %75 = vector.load %arg7[%c14_96, %c128_97] : memref<16x160xf32, #tpu.memory_space<vmem>>, vector<1x32xf32>
    tpu.vector_store %arg7[%c14_96, %c128_97], %74 {strides = array<i32>} : memref<16x160xf32, #tpu.memory_space<vmem>>, vector<1x32xf32>,
    %c1_98 = arith.constant 1 : index
    %c0_99 = arith.constant 0 : index
    %76 = memref.load %arg0[%c1_98, %c0_99] : memref<2x12xi32, #tpu.memory_space<smem>>
    %77 = arith.index_cast %76 : i32 to index
    %c0_100 = arith.constant 0 : index
    %78 = vector.load %arg1[%77, %c0_100] : memref<50x32xf32, #tpu.memory_space<vmem>>, vector<1x32xf32>
    %c1_101 = arith.constant 1 : index
    %c0_102 = arith.constant 0 : index
    %79 = vector.load %arg7[%c1_101, %c0_102] : memref<16x160xf32, #tpu.memory_space<vmem>>, vector<1x32xf32>
    tpu.vector_store %arg7[%c1_101, %c0_102], %78 {strides = array<i32>} : memref<16x160xf32, #tpu.memory_space<vmem>>, vector<1x32xf32>,
    %c1_103 = arith.constant 1 : index
    %c1_104 = arith.constant 1 : index
    %80 = memref.load %arg0[%c1_103, %c1_104] : memref<2x12xi32, #tpu.memory_space<smem>>
    %81 = arith.index_cast %80 : i32 to index
    %c0_105 = arith.constant 0 : index
    %82 = vector.load %arg1[%81, %c0_105] : memref<50x32xf32, #tpu.memory_space<vmem>>, vector<1x32xf32>
    %c9_106 = arith.constant 9 : index
    %c0_107 = arith.constant 0 : index
    %83 = vector.load %arg7[%c9_106, %c0_107] : memref<16x160xf32, #tpu.memory_space<vmem>>, vector<1x32xf32>
    tpu.vector_store %arg7[%c9_106, %c0_107], %82 {strides = array<i32>} : memref<16x160xf32, #tpu.memory_space<vmem>>, vector<1x32xf32>,
    %c1_108 = arith.constant 1 : index
    %c32_109 = arith.constant 32 : index
    %84 = vector.load %arg7[%c1_108, %c32_109] : memref<16x160xf32, #tpu.memory_space<vmem>>, vector<1x32xf32>
    tpu.vector_store %arg7[%c1_108, %c32_109], %82 {strides = array<i32>} : memref<16x160xf32, #tpu.memory_space<vmem>>, vector<1x32xf32>,
    %c1_110 = arith.constant 1 : index
    %c2_111 = arith.constant 2 : index
    %85 = memref.load %arg0[%c1_110, %c2_111] : memref<2x12xi32, #tpu.memory_space<smem>>
    %86 = arith.index_cast %85 : i32 to index
    %c0_112 = arith.constant 0 : index
    %87 = vector.load %arg1[%86, %c0_112] : memref<50x32xf32, #tpu.memory_space<vmem>>, vector<1x32xf32>
    %c3_113 = arith.constant 3 : index
    %c0_114 = arith.constant 0 : index
    %88 = vector.load %arg7[%c3_113, %c0_114] : memref<16x160xf32, #tpu.memory_space<vmem>>, vector<1x32xf32>
    tpu.vector_store %arg7[%c3_113, %c0_114], %87 {strides = array<i32>} : memref<16x160xf32, #tpu.memory_space<vmem>>, vector<1x32xf32>,
    %c9_115 = arith.constant 9 : index
    %c32_116 = arith.constant 32 : index
    %89 = vector.load %arg7[%c9_115, %c32_116] : memref<16x160xf32, #tpu.memory_space<vmem>>, vector<1x32xf32>
    tpu.vector_store %arg7[%c9_115, %c32_116], %87 {strides = array<i32>} : memref<16x160xf32, #tpu.memory_space<vmem>>, vector<1x32xf32>,
    %c1_117 = arith.constant 1 : index
    %c64_118 = arith.constant 64 : index
    %90 = vector.load %arg7[%c1_117, %c64_118] : memref<16x160xf32, #tpu.memory_space<vmem>>, vector<1x32xf32>
    tpu.vector_store %arg7[%c1_117, %c64_118], %87 {strides = array<i32>} : memref<16x160xf32, #tpu.memory_space<vmem>>, vector<1x32xf32>,
    %c1_119 = arith.constant 1 : index
    %c3_120 = arith.constant 3 : index
    %91 = memref.load %arg0[%c1_119, %c3_120] : memref<2x12xi32, #tpu.memory_space<smem>>
    %92 = arith.index_cast %91 : i32 to index
    %c0_121 = arith.constant 0 : index
    %93 = vector.load %arg1[%92, %c0_121] : memref<50x32xf32, #tpu.memory_space<vmem>>, vector<1x32xf32>
    %c11_122 = arith.constant 11 : index
    %c0_123 = arith.constant 0 : index
    %94 = vector.load %arg7[%c11_122, %c0_123] : memref<16x160xf32, #tpu.memory_space<vmem>>, vector<1x32xf32>
    tpu.vector_store %arg7[%c11_122, %c0_123], %93 {strides = array<i32>} : memref<16x160xf32, #tpu.memory_space<vmem>>, vector<1x32xf32>,
    %c3_124 = arith.constant 3 : index
    %c32_125 = arith.constant 32 : index
    %95 = vector.load %arg7[%c3_124, %c32_125] : memref<16x160xf32, #tpu.memory_space<vmem>>, vector<1x32xf32>
    tpu.vector_store %arg7[%c3_124, %c32_125], %93 {strides = array<i32>} : memref<16x160xf32, #tpu.memory_space<vmem>>, vector<1x32xf32>,
    %c9_126 = arith.constant 9 : index
    %c64_127 = arith.constant 64 : index
    %96 = vector.load %arg7[%c9_126, %c64_127] : memref<16x160xf32, #tpu.memory_space<vmem>>, vector<1x32xf32>
    tpu.vector_store %arg7[%c9_126, %c64_127], %93 {strides = array<i32>} : memref<16x160xf32, #tpu.memory_space<vmem>>, vector<1x32xf32>,
    %c1_128 = arith.constant 1 : index
    %c96_129 = arith.constant 96 : index
    %97 = vector.load %arg7[%c1_128, %c96_129] : memref<16x160xf32, #tpu.memory_space<vmem>>, vector<1x32xf32>
    tpu.vector_store %arg7[%c1_128, %c96_129], %93 {strides = array<i32>} : memref<16x160xf32, #tpu.memory_space<vmem>>, vector<1x32xf32>,
    %c1_130 = arith.constant 1 : index
    %c4_131 = arith.constant 4 : index
    %98 = memref.load %arg0[%c1_130, %c4_131] : memref<2x12xi32, #tpu.memory_space<smem>>
    %99 = arith.index_cast %98 : i32 to index
    %c0_132 = arith.constant 0 : index
    %100 = vector.load %arg1[%99, %c0_132] : memref<50x32xf32, #tpu.memory_space<vmem>>, vector<1x32xf32>
    %c5_133 = arith.constant 5 : index
    %c0_134 = arith.constant 0 : index
    %101 = vector.load %arg7[%c5_133, %c0_134] : memref<16x160xf32, #tpu.memory_space<vmem>>, vector<1x32xf32>
    tpu.vector_store %arg7[%c5_133, %c0_134], %100 {strides = array<i32>} : memref<16x160xf32, #tpu.memory_space<vmem>>, vector<1x32xf32>,
    %c11_135 = arith.constant 11 : index
    %c32_136 = arith.constant 32 : index
    %102 = vector.load %arg7[%c11_135, %c32_136] : memref<16x160xf32, #tpu.memory_space<vmem>>, vector<1x32xf32>
    tpu.vector_store %arg7[%c11_135, %c32_136], %100 {strides = array<i32>} : memref<16x160xf32, #tpu.memory_space<vmem>>, vector<1x32xf32>,
    %c3_137 = arith.constant 3 : index
    %c64_138 = arith.constant 64 : index
    %103 = vector.load %arg7[%c3_137, %c64_138] : memref<16x160xf32, #tpu.memory_space<vmem>>, vector<1x32xf32>
    tpu.vector_store %arg7[%c3_137, %c64_138], %100 {strides = array<i32>} : memref<16x160xf32, #tpu.memory_space<vmem>>, vector<1x32xf32>,
    %c9_139 = arith.constant 9 : index
    %c96_140 = arith.constant 96 : index
    %104 = vector.load %arg7[%c9_139, %c96_140] : memref<16x160xf32, #tpu.memory_space<vmem>>, vector<1x32xf32>
    tpu.vector_store %arg7[%c9_139, %c96_140], %100 {strides = array<i32>} : memref<16x160xf32, #tpu.memory_space<vmem>>, vector<1x32xf32>,
    %c1_141 = arith.constant 1 : index
    %c128_142 = arith.constant 128 : index
    %105 = vector.load %arg7[%c1_141, %c128_142] : memref<16x160xf32, #tpu.memory_space<vmem>>, vector<1x32xf32>
    tpu.vector_store %arg7[%c1_141, %c128_142], %100 {strides = array<i32>} : memref<16x160xf32, #tpu.memory_space<vmem>>, vector<1x32xf32>,
    %c1_143 = arith.constant 1 : index
    %c5_144 = arith.constant 5 : index
    %106 = memref.load %arg0[%c1_143, %c5_144] : memref<2x12xi32, #tpu.memory_space<smem>>
    %107 = arith.index_cast %106 : i32 to index
    %c0_145 = arith.constant 0 : index
    %108 = vector.load %arg1[%107, %c0_145] : memref<50x32xf32, #tpu.memory_space<vmem>>, vector<1x32xf32>
    %c13 = arith.constant 13 : index
    %c0_146 = arith.constant 0 : index
    %109 = vector.load %arg7[%c13, %c0_146] : memref<16x160xf32, #tpu.memory_space<vmem>>, vector<1x32xf32>
    tpu.vector_store %arg7[%c13, %c0_146], %108 {strides = array<i32>} : memref<16x160xf32, #tpu.memory_space<vmem>>, vector<1x32xf32>,
    %c5_147 = arith.constant 5 : index
    %c32_148 = arith.constant 32 : index
    %110 = vector.load %arg7[%c5_147, %c32_148] : memref<16x160xf32, #tpu.memory_space<vmem>>, vector<1x32xf32>
    tpu.vector_store %arg7[%c5_147, %c32_148], %108 {strides = array<i32>} : memref<16x160xf32, #tpu.memory_space<vmem>>, vector<1x32xf32>,
    %c11_149 = arith.constant 11 : index
    %c64_150 = arith.constant 64 : index
    %111 = vector.load %arg7[%c11_149, %c64_150] : memref<16x160xf32, #tpu.memory_space<vmem>>, vector<1x32xf32>
    tpu.vector_store %arg7[%c11_149, %c64_150], %108 {strides = array<i32>} : memref<16x160xf32, #tpu.memory_space<vmem>>, vector<1x32xf32>,
    %c3_151 = arith.constant 3 : index
    %c96_152 = arith.constant 96 : index
    %112 = vector.load %arg7[%c3_151, %c96_152] : memref<16x160xf32, #tpu.memory_space<vmem>>, vector<1x32xf32>
    tpu.vector_store %arg7[%c3_151, %c96_152], %108 {strides = array<i32>} : memref<16x160xf32, #tpu.memory_space<vmem>>, vector<1x32xf32>,
    %c9_153 = arith.constant 9 : index
    %c128_154 = arith.constant 128 : index
    %113 = vector.load %arg7[%c9_153, %c128_154] : memref<16x160xf32, #tpu.memory_space<vmem>>, vector<1x32xf32>
    tpu.vector_store %arg7[%c9_153, %c128_154], %108 {strides = array<i32>} : memref<16x160xf32, #tpu.memory_space<vmem>>, vector<1x32xf32>,
    %c1_155 = arith.constant 1 : index
    %c6_156 = arith.constant 6 : index
    %114 = memref.load %arg0[%c1_155, %c6_156] : memref<2x12xi32, #tpu.memory_space<smem>>
    %115 = arith.index_cast %114 : i32 to index
    %c0_157 = arith.constant 0 : index
    %116 = vector.load %arg1[%115, %c0_157] : memref<50x32xf32, #tpu.memory_space<vmem>>, vector<1x32xf32>
    %c7_158 = arith.constant 7 : index
    %c0_159 = arith.constant 0 : index
    %117 = vector.load %arg7[%c7_158, %c0_159] : memref<16x160xf32, #tpu.memory_space<vmem>>, vector<1x32xf32>
    tpu.vector_store %arg7[%c7_158, %c0_159], %116 {strides = array<i32>} : memref<16x160xf32, #tpu.memory_space<vmem>>, vector<1x32xf32>,
    %c13_160 = arith.constant 13 : index
    %c32_161 = arith.constant 32 : index
    %118 = vector.load %arg7[%c13_160, %c32_161] : memref<16x160xf32, #tpu.memory_space<vmem>>, vector<1x32xf32>
    tpu.vector_store %arg7[%c13_160, %c32_161], %116 {strides = array<i32>} : memref<16x160xf32, #tpu.memory_space<vmem>>, vector<1x32xf32>,
    %c5_162 = arith.constant 5 : index
    %c64_163 = arith.constant 64 : index
    %119 = vector.load %arg7[%c5_162, %c64_163] : memref<16x160xf32, #tpu.memory_space<vmem>>, vector<1x32xf32>
    tpu.vector_store %arg7[%c5_162, %c64_163], %116 {strides = array<i32>} : memref<16x160xf32, #tpu.memory_space<vmem>>, vector<1x32xf32>,
    %c11_164 = arith.constant 11 : index
    %c96_165 = arith.constant 96 : index
    %120 = vector.load %arg7[%c11_164, %c96_165] : memref<16x160xf32, #tpu.memory_space<vmem>>, vector<1x32xf32>
    tpu.vector_store %arg7[%c11_164, %c96_165], %116 {strides = array<i32>} : memref<16x160xf32, #tpu.memory_space<vmem>>, vector<1x32xf32>,
    %c3_166 = arith.constant 3 : index
    %c128_167 = arith.constant 128 : index
    %121 = vector.load %arg7[%c3_166, %c128_167] : memref<16x160xf32, #tpu.memory_space<vmem>>, vector<1x32xf32>
    tpu.vector_store %arg7[%c3_166, %c128_167], %116 {strides = array<i32>} : memref<16x160xf32, #tpu.memory_space<vmem>>, vector<1x32xf32>,
    %c1_168 = arith.constant 1 : index
    %c7_169 = arith.constant 7 : index
    %122 = memref.load %arg0[%c1_168, %c7_169] : memref<2x12xi32, #tpu.memory_space<smem>>
    %123 = arith.index_cast %122 : i32 to index
    %c0_170 = arith.constant 0 : index
    %124 = vector.load %arg1[%123, %c0_170] : memref<50x32xf32, #tpu.memory_space<vmem>>, vector<1x32xf32>
    %c15 = arith.constant 15 : index
    %c0_171 = arith.constant 0 : index
    %125 = vector.load %arg7[%c15, %c0_171] : memref<16x160xf32, #tpu.memory_space<vmem>>, vector<1x32xf32>
    tpu.vector_store %arg7[%c15, %c0_171], %124 {strides = array<i32>} : memref<16x160xf32, #tpu.memory_space<vmem>>, vector<1x32xf32>,
    %c7_172 = arith.constant 7 : index
    %c32_173 = arith.constant 32 : index
    %126 = vector.load %arg7[%c7_172, %c32_173] : memref<16x160xf32, #tpu.memory_space<vmem>>, vector<1x32xf32>
    tpu.vector_store %arg7[%c7_172, %c32_173], %124 {strides = array<i32>} : memref<16x160xf32, #tpu.memory_space<vmem>>, vector<1x32xf32>,
    %c13_174 = arith.constant 13 : index
    %c64_175 = arith.constant 64 : index
    %127 = vector.load %arg7[%c13_174, %c64_175] : memref<16x160xf32, #tpu.memory_space<vmem>>, vector<1x32xf32>
    tpu.vector_store %arg7[%c13_174, %c64_175], %124 {strides = array<i32>} : memref<16x160xf32, #tpu.memory_space<vmem>>, vector<1x32xf32>,
    %c5_176 = arith.constant 5 : index
    %c96_177 = arith.constant 96 : index
    %128 = vector.load %arg7[%c5_176, %c96_177] : memref<16x160xf32, #tpu.memory_space<vmem>>, vector<1x32xf32>
    tpu.vector_store %arg7[%c5_176, %c96_177], %124 {strides = array<i32>} : memref<16x160xf32, #tpu.memory_space<vmem>>, vector<1x32xf32>,
    %c11_178 = arith.constant 11 : index
    %c128_179 = arith.constant 128 : index
    %129 = vector.load %arg7[%c11_178, %c128_179] : memref<16x160xf32, #tpu.memory_space<vmem>>, vector<1x32xf32>
    tpu.vector_store %arg7[%c11_178, %c128_179], %124 {strides = array<i32>} : memref<16x160xf32, #tpu.memory_space<vmem>>, vector<1x32xf32>,
    %c1_180 = arith.constant 1 : index
    %c8_181 = arith.constant 8 : index
    %130 = memref.load %arg0[%c1_180, %c8_181] : memref<2x12xi32, #tpu.memory_space<smem>>
    %131 = arith.index_cast %130 : i32 to index
    %c0_182 = arith.constant 0 : index
    %132 = vector.load %arg1[%131, %c0_182] : memref<50x32xf32, #tpu.memory_space<vmem>>, vector<1x32xf32>
    %c15_183 = arith.constant 15 : index
    %c32_184 = arith.constant 32 : index
    %133 = vector.load %arg7[%c15_183, %c32_184] : memref<16x160xf32, #tpu.memory_space<vmem>>, vector<1x32xf32>
    tpu.vector_store %arg7[%c15_183, %c32_184], %132 {strides = array<i32>} : memref<16x160xf32, #tpu.memory_space<vmem>>, vector<1x32xf32>,
    %c7_185 = arith.constant 7 : index
    %c64_186 = arith.constant 64 : index
    %134 = vector.load %arg7[%c7_185, %c64_186] : memref<16x160xf32, #tpu.memory_space<vmem>>, vector<1x32xf32>
    tpu.vector_store %arg7[%c7_185, %c64_186], %132 {strides = array<i32>} : memref<16x160xf32, #tpu.memory_space<vmem>>, vector<1x32xf32>,
    %c13_187 = arith.constant 13 : index
    %c96_188 = arith.constant 96 : index
    %135 = vector.load %arg7[%c13_187, %c96_188] : memref<16x160xf32, #tpu.memory_space<vmem>>, vector<1x32xf32>
    tpu.vector_store %arg7[%c13_187, %c96_188], %132 {strides = array<i32>} : memref<16x160xf32, #tpu.memory_space<vmem>>, vector<1x32xf32>,
    %c5_189 = arith.constant 5 : index
    %c128_190 = arith.constant 128 : index
    %136 = vector.load %arg7[%c5_189, %c128_190] : memref<16x160xf32, #tpu.memory_space<vmem>>, vector<1x32xf32>
    tpu.vector_store %arg7[%c5_189, %c128_190], %132 {strides = array<i32>} : memref<16x160xf32, #tpu.memory_space<vmem>>, vector<1x32xf32>,
    %c1_191 = arith.constant 1 : index
    %c9_192 = arith.constant 9 : index
    %137 = memref.load %arg0[%c1_191, %c9_192] : memref<2x12xi32, #tpu.memory_space<smem>>
    %138 = arith.index_cast %137 : i32 to index
    %c0_193 = arith.constant 0 : index
    %139 = vector.load %arg1[%138, %c0_193] : memref<50x32xf32, #tpu.memory_space<vmem>>, vector<1x32xf32>
    %c15_194 = arith.constant 15 : index
    %c64_195 = arith.constant 64 : index
    %140 = vector.load %arg7[%c15_194, %c64_195] : memref<16x160xf32, #tpu.memory_space<vmem>>, vector<1x32xf32>
    tpu.vector_store %arg7[%c15_194, %c64_195], %139 {strides = array<i32>} : memref<16x160xf32, #tpu.memory_space<vmem>>, vector<1x32xf32>,
    %c7_196 = arith.constant 7 : index
    %c96_197 = arith.constant 96 : index
    %141 = vector.load %arg7[%c7_196, %c96_197] : memref<16x160xf32, #tpu.memory_space<vmem>>, vector<1x32xf32>
    tpu.vector_store %arg7[%c7_196, %c96_197], %139 {strides = array<i32>} : memref<16x160xf32, #tpu.memory_space<vmem>>, vector<1x32xf32>,
    %c13_198 = arith.constant 13 : index
    %c128_199 = arith.constant 128 : index
    %142 = vector.load %arg7[%c13_198, %c128_199] : memref<16x160xf32, #tpu.memory_space<vmem>>, vector<1x32xf32>
    tpu.vector_store %arg7[%c13_198, %c128_199], %139 {strides = array<i32>} : memref<16x160xf32, #tpu.memory_space<vmem>>, vector<1x32xf32>,
    %c1_200 = arith.constant 1 : index
    %c10_201 = arith.constant 10 : index
    %143 = memref.load %arg0[%c1_200, %c10_201] : memref<2x12xi32, #tpu.memory_space<smem>>
    %144 = arith.index_cast %143 : i32 to index
    %c0_202 = arith.constant 0 : index
    %145 = vector.load %arg1[%144, %c0_202] : memref<50x32xf32, #tpu.memory_space<vmem>>, vector<1x32xf32>
    %c15_203 = arith.constant 15 : index
    %c96_204 = arith.constant 96 : index
    %146 = vector.load %arg7[%c15_203, %c96_204] : memref<16x160xf32, #tpu.memory_space<vmem>>, vector<1x32xf32>
    tpu.vector_store %arg7[%c15_203, %c96_204], %145 {strides = array<i32>} : memref<16x160xf32, #tpu.memory_space<vmem>>, vector<1x32xf32>,
    %c7_205 = arith.constant 7 : index
    %c128_206 = arith.constant 128 : index
    %147 = vector.load %arg7[%c7_205, %c128_206] : memref<16x160xf32, #tpu.memory_space<vmem>>, vector<1x32xf32>
    tpu.vector_store %arg7[%c7_205, %c128_206], %145 {strides = array<i32>} : memref<16x160xf32, #tpu.memory_space<vmem>>, vector<1x32xf32>,
    %c1_207 = arith.constant 1 : index
    %c11_208 = arith.constant 11 : index
    %148 = memref.load %arg0[%c1_207, %c11_208] : memref<2x12xi32, #tpu.memory_space<smem>>
    %149 = arith.index_cast %148 : i32 to index
    %c0_209 = arith.constant 0 : index
    %150 = vector.load %arg1[%149, %c0_209] : memref<50x32xf32, #tpu.memory_space<vmem>>, vector<1x32xf32>
    %c15_210 = arith.constant 15 : index
    %c128_211 = arith.constant 128 : index
    %151 = vector.load %arg7[%c15_210, %c128_211] : memref<16x160xf32, #tpu.memory_space<vmem>>, vector<1x32xf32>
    tpu.vector_store %arg7[%c15_210, %c128_211], %150 {strides = array<i32>} : memref<16x160xf32, #tpu.memory_space<vmem>>, vector<1x32xf32>,
    %c0_212 = arith.constant 0 : index
    %c0_213 = arith.constant 0 : index
    %152 = vector.load %arg7[%c0_212, %c0_213] : memref<16x160xf32, #tpu.memory_space<vmem>>, vector<16x160xf32>
    %c0_214 = arith.constant 0 : index
    %c0_215 = arith.constant 0 : index
    %153 = vector.load %arg2[%c0_214, %c0_215] : memref<160x10xf32, #tpu.memory_space<vmem>>, vector<160x10xf32>
    %cst = arith.constant dense<0.000000e+00> : vector<16x10xf32>
    %154 = tpu.matmul %152, %153, %cst {dimension_numbers = #tpu.dot_dimension_numbers<[1], [0], [0], [1], [0, 0, 1, 1], [], []>} : vector<16x160xf32>, vector<160x10xf32>, vector<16x10xf32> -> vector<16x10xf32>
    %155 = vector.extract_strided_slice %154 {offsets = [0, 0], sizes = [8, 10], strides = [1, 1]} : vector<16x10xf32> to vector<8x10xf32>
    %156 = vector.extract_strided_slice %154 {offsets = [8, 0], sizes = [8, 10], strides = [1, 1]} : vector<16x10xf32> to vector<8x10xf32>
    %157 = arith.maximumf %155, %156 : vector<8x10xf32>
    %c0_216 = arith.constant 0 : index
    %c0_217 = arith.constant 0 : index
    %158 = vector.load %arg3[%c0_216, %c0_217] : memref<1x10xf32, #tpu.memory_space<vmem>>, vector<1x10xf32>
    %159 = vector.broadcast %158 : vector<1x10xf32> to vector<8x10xf32>
    %160 = arith.addf %157, %159 : vector<8x10xf32>
    %cst_218 = arith.constant 0.000000e+00 : f32
    %161 = vector.broadcast %cst_218 : f32 to vector<8x10xf32>
    %162 = arith.maximumf %160, %161 : vector<8x10xf32>
    %cst_219 = arith.constant 0.000000e+00 : f32
    %163 = vector.broadcast %cst_219 : f32 to vector<2x8xf32>
    %164 = vector.extract_strided_slice %162 {offsets = [0, 0], sizes = [2, 10], strides = [1, 1]} : vector<8x10xf32> to vector<2x10xf32>
    %c0_220 = arith.constant 0 : index
    %c0_221 = arith.constant 0 : index
    %165 = vector.load %arg4[%c0_220, %c0_221] : memref<40x8xf32, #tpu.memory_space<vmem>>, vector<10x8xf32>
    %cst_222 = arith.constant dense<0.000000e+00> : vector<2x8xf32>
    %166 = tpu.matmul %164, %165, %cst_222 {dimension_numbers = #tpu.dot_dimension_numbers<[1], [0], [0], [1], [0, 0, 1, 1], [], []>} : vector<2x10xf32>, vector<10x8xf32>, vector<2x8xf32> -> vector<2x8xf32>
    %167 = arith.addf %163, %166 : vector<2x8xf32>
    %168 = vector.extract_strided_slice %162 {offsets = [2, 0], sizes = [2, 10], strides = [1, 1]} : vector<8x10xf32> to vector<2x10xf32>
    %c10_223 = arith.constant 10 : index
    %c0_224 = arith.constant 0 : index
    %169 = vector.load %arg4[%c10_223, %c0_224] : memref<40x8xf32, #tpu.memory_space<vmem>>, vector<10x8xf32>
    %cst_225 = arith.constant dense<0.000000e+00> : vector<2x8xf32>
    %170 = tpu.matmul %168, %169, %cst_225 {dimension_numbers = #tpu.dot_dimension_numbers<[1], [0], [0], [1], [0, 0, 1, 1], [], []>} : vector<2x10xf32>, vector<10x8xf32>, vector<2x8xf32> -> vector<2x8xf32>
    %171 = arith.addf %167, %170 : vector<2x8xf32>
    %172 = vector.extract_strided_slice %162 {offsets = [4, 0], sizes = [2, 10], strides = [1, 1]} : vector<8x10xf32> to vector<2x10xf32>
    %c20 = arith.constant 20 : index
    %c0_226 = arith.constant 0 : index
    %173 = vector.load %arg4[%c20, %c0_226] : memref<40x8xf32, #tpu.memory_space<vmem>>, vector<10x8xf32>
    %cst_227 = arith.constant dense<0.000000e+00> : vector<2x8xf32>
    %174 = tpu.matmul %172, %173, %cst_227 {dimension_numbers = #tpu.dot_dimension_numbers<[1], [0], [0], [1], [0, 0, 1, 1], [], []>} : vector<2x10xf32>, vector<10x8xf32>, vector<2x8xf32> -> vector<2x8xf32>
    %175 = arith.addf %171, %174 : vector<2x8xf32>
    %176 = vector.extract_strided_slice %162 {offsets = [6, 0], sizes = [2, 10], strides = [1, 1]} : vector<8x10xf32> to vector<2x10xf32>
    %c30 = arith.constant 30 : index
    %c0_228 = arith.constant 0 : index
    %177 = vector.load %arg4[%c30, %c0_228] : memref<40x8xf32, #tpu.memory_space<vmem>>, vector<10x8xf32>
    %cst_229 = arith.constant dense<0.000000e+00> : vector<2x8xf32>
    %178 = tpu.matmul %176, %177, %cst_229 {dimension_numbers = #tpu.dot_dimension_numbers<[1], [0], [0], [1], [0, 0, 1, 1], [], []>} : vector<2x10xf32>, vector<10x8xf32>, vector<2x8xf32> -> vector<2x8xf32>
    %179 = arith.addf %175, %178 : vector<2x8xf32>
    %c0_230 = arith.constant 0 : index
    %c0_231 = arith.constant 0 : index
    %180 = vector.load %arg5[%c0_230, %c0_231] : memref<1x8xf32, #tpu.memory_space<vmem>>, vector<1x8xf32>
    %181 = vector.broadcast %180 : vector<1x8xf32> to vector<2x8xf32>
    %182 = arith.addf %179, %181 : vector<2x8xf32>
    %cst_232 = arith.constant dense<0xFF800000> : vector<2xf32>
    %183 = vector.multi_reduction <maximumf>, %182, %cst_232 [1] : vector<2x8xf32> to vector<2xf32>
    %184 = vector.shape_cast %183 : vector<2xf32> to vector<2x1xf32>
    %185 = vector.broadcast %184 : vector<2x1xf32> to vector<2x8xf32>
    %186 = arith.subf %182, %185 : vector<2x8xf32>
    %187 = math.exp %186 : vector<2x8xf32>
    %cst_233 = arith.constant dense<0.000000e+00> : vector<2xf32>
    %188 = vector.multi_reduction <add>, %187, %cst_233 [1] : vector<2x8xf32> to vector<2xf32>
    %189 = vector.shape_cast %188 : vector<2xf32> to vector<2x1xf32>
    %190 = math.log %189 : vector<2x1xf32>
    %191 = vector.broadcast %190 : vector<2x1xf32> to vector<2x8xf32>
    %192 = arith.subf %186, %191 : vector<2x8xf32>
    %c0_234 = arith.constant 0 : index
    %c0_235 = arith.constant 0 : index
    %193 = vector.load %arg6[%c0_234, %c0_235] : memref<2x8xf32, #tpu.memory_space<vmem>>, vector<2x8xf32>
    tpu.vector_store %arg6[%c0_234, %c0_235], %192 {strides = array<i32>} : memref<2x8xf32, #tpu.memory_space<vmem>>, vector<2x8xf32>,
    return
  }
}

</mosaic_0001>

<llo_original>
// kernel: textcnn_forward.1
$region0: #{textcnn_forward.1}
  #allocation0 [shape = 'u32[]', space=smem, size = 0x4, offset = 0x4, fixed_abs, tag = 'smem constant byte address 0x4 - core index']
  #allocation1 [shape = 'u32[144,128]{1,0:T(1,128)}', space=vmem, size = 0x12000, scoped, tag = 'internal scratch']
  #allocation2 [shape = 'f32[16,160]{1,0:T(8,128)}', space=vmem, size = 0x4000, scoped, tag = 'scratch operand']
  %s0 = inlined_call_operand.vmem [shape: s32[2,12], index: 0, kind: input, shape index: {}]
  %s1 = inlined_call_operand.vmem [shape: f32[50,32], index: 1, kind: input, shape index: {}]
  %s2 = inlined_call_operand.vmem [shape: f32[160,10], index: 2, kind: input, shape index: {}]
  %s3 = inlined_call_operand.vmem [shape: f32[1,10], index: 3, kind: input, shape index: {}]
  %s4 = inlined_call_operand.vmem [shape: f32[40,8], index: 4, kind: input, shape index: {}]
  %s5 = inlined_call_operand.vmem [shape: f32[1,8], index: 5, kind: input, shape index: {}]
  %s6 = inlined_call_operand.hbm [shape: f32[2,8], index: 6, kind: output, shape index: {}]
  %s7 = sld [smem:[#allocation0]]
  $region38: #{textcnn_forward.1} parent=0
    _
  %s9 = ssub.s32 1, %s7
  %s10 = scalar_select 0, %s9, %s7
  $region1: #{textcnn_forward.1} parent=0
    #allocation3 [shape = 'u8[1024]{0}', space=smem, size = 0x400, scoped, tag = 'input window, operand 0, single buffered']
    #allocation4 [shape = 's32[1]{0}', space=sflag, size = 0x4, scoped, tag = 'scoped memory for textcnn_forward.1']
    #allocation5 [shape = 's32[1]{0}', space=sflag, size = 0x4, scoped, tag = 'scoped memory for textcnn_forward.1']
    #allocation6 [shape = 'u8[1024]{0}', space=vmem, size = 0x400, scoped, tag = 'output window, operand 0, single buffered']
    %11 = vsyncpa [#allocation5], 0
    %12 = vsyncpa [#allocation4], 0
    // Predicated region
    $region2: #{textcnn_forward.1} parent=1 // pred_check
      _
    $region3: #{textcnn_forward.1} parent=1 // pred_check_branch
      %14 = sbr.rel (0) target = $region5
    $region4: #{textcnn_forward.1} parent=1 // pred_region
      %s16 = ssub.s32 32, 32
      %17 = vsyncadd [#allocation5], %s16
      %s19 = sshll.u32 %s0, 4
      %s20 = int_to_ptr.vmem [resolvable:$true] %s19
      %22 = dma.vmem_to_smem %s20, 32, [#allocation3], [#allocation5]
    $region5: #{textcnn_forward.1} parent=1 // pred_fallthru
      _
    // Predicated region
    $region6: #{textcnn_forward.1} parent=1 // pred_check
      _
    $region7: #{textcnn_forward.1} parent=1 // pred_check_branch
      %24 = sbr.rel (0) target = $region9
    $region8: #{textcnn_forward.1} parent=1 // pred_region
      _
    $region9: #{textcnn_forward.1} parent=1 // pred_fallthru
      _
    // Predicated region
    $region10: #{textcnn_forward.1} parent=1 // pred_check
      _
    $region11: #{textcnn_forward.1} parent=1 // pred_check_branch
      %26 = sbr.rel (0) target = $region13
    $region12: #{textcnn_forward.1} parent=1 // pred_region
      _
    $region13: #{textcnn_forward.1} parent=1 // pred_fallthru
      _
    // Predicated region
    $region14: #{textcnn_forward.1} parent=1 // pred_check
      _
    $region15: #{textcnn_forward.1} parent=1 // pred_check_branch
      %28 = sbr.rel (0) target = $region17
    $region16: #{textcnn_forward.1} parent=1 // pred_region
      _
    $region17: #{textcnn_forward.1} parent=1 // pred_fallthru
      _
    // Predicated region
    $region18: #{textcnn_forward.1} parent=1 // pred_check
      _
    $region19: #{textcnn_forward.1} parent=1 // pred_check_branch
      %30 = sbr.rel (0) target = $region21
    $region20: #{textcnn_forward.1} parent=1 // pred_region
      _
    $region21: #{textcnn_forward.1} parent=1 // pred_fallthru
      _
    // Predicated region
    $region22: #{textcnn_forward.1} parent=1 // pred_check
      _
    $region23: #{textcnn_forward.1} parent=1 // pred_check_branch
      %32 = sbr.rel (0) target = $region25
    $region24: #{textcnn_forward.1} parent=1 // pred_region
      _
    $region25: #{textcnn_forward.1} parent=1 // pred_fallthru
      _
    // Predicated region
    $region26: #{textcnn_forward.1} parent=1 // pred_check
      _
    $region27: #{textcnn_forward.1} parent=1 // pred_check_branch
      %34 = sbr.rel (0) target = $region29
    $region28: #{textcnn_forward.1} parent=1 // pred_region
      %35 = dma.done [#allocation5], 32
    $region29: #{textcnn_forward.1} parent=1 // pred_fallthru
      _
    %36 = sfence
    %s37 = sld [smem:[#allocation3]]
    %s38 = scalar_lea.vmem %s1, %s37
    %v39 = vld [vmem:[%s38] sm:$0x1]
    %vm40 = vcmask 253952
    %41 = vst.msk [vmem:[#allocation2] sm:$0x1] %vm40, %v39
    %s42 = sld [smem:[#allocation3 + $0x1]]
    %s43 = scalar_lea.vmem %s1, %s42
    %v44 = vld [vmem:[%s43] sm:$0x1]
    %45 = vst.msk [vmem:[#allocation2 + $0x10] sm:$0x1] %vm40, %v44
    %47 = vrot.lane.b32.xlu0 %v44, 32
    %v48 = vpop.permute.xlu0 %47
    %vm50 = vcmask 516352
    %51 = vst.msk [vmem:[#allocation2] sm:$0x1] %vm50, %v48
    %s52 = sld [smem:[#allocation3 + $0x2]]
    %s53 = scalar_lea.vmem %s1, %s52
    %v54 = vld [vmem:[%s53] sm:$0x1]
    %55 = vst.msk [vmem:[#allocation2 + $0x2] sm:$0x1] %vm40, %v54
    %57 = vrot.lane.b32.xlu0 %v54, 32
    %v58 = vpop.permute.xlu0 %57
    %60 = vst.msk [vmem:[#allocation2 + $0x10] sm:$0x1] %vm50, %v58
    %61 = vrot.lane.b32.xlu0 %v54, 64
    %v62 = vpop.permute.xlu0 %61
    %vm64 = vcmask 778752
    %65 = vst.msk [vmem:[#allocation2] sm:$0x1] %vm64, %v62
    %s66 = sld [smem:[#allocation3 + $0x3]]
    %s67 = scalar_lea.vmem %s1, %s66
    %v68 = vld [vmem:[%s67] sm:$0x1]
    %69 = vst.msk [vmem:[#allocation2 + $0x12] sm:$0x1] %vm40, %v68
    %71 = vrot.lane.b32.xlu0 %v68, 32
    %v72 = vpop.permute.xlu0 %71
    %74 = vst.msk [vmem:[#allocation2 + $0x2] sm:$0x1] %vm50, %v72
    %75 = vrot.lane.b32.xlu0 %v68, 64
    %v76 = vpop.permute.xlu0 %75
    %78 = vst.msk [vmem:[#allocation2 + $0x10] sm:$0x1] %vm64, %v76
    %79 = vrot.lane.b32.xlu0 %v68, 96
    %v80 = vpop.permute.xlu0 %79
    %vm82 = vcmask 1041152
    %83 = vst.msk [vmem:[#allocation2] sm:$0x1] %vm82, %v80
    %s84 = sld [smem:[#allocation3 + $0x4]]
    %s85 = scalar_lea.vmem %s1, %s84
    %v86 = vld [vmem:[%s85] sm:$0x1]
    %87 = vst.msk [vmem:[#allocation2 + $0x4] sm:$0x1] %vm40, %v86
    %89 = vrot.lane.b32.xlu0 %v86, 32
    %v90 = vpop.permute.xlu0 %89
    %92 = vst.msk [vmem:[#allocation2 + $0x12] sm:$0x1] %vm50, %v90
    %93 = vrot.lane.b32.xlu0 %v86, 64
    %v94 = vpop.permute.xlu0 %93
    %96 = vst.msk [vmem:[#allocation2 + $0x2] sm:$0x1] %vm64, %v94
    %97 = vrot.lane.b32.xlu0 %v86, 96
    %v98 = vpop.permute.xlu0 %97
    %100 = vst.msk [vmem:[#allocation2 + $0x10] sm:$0x1] %vm82, %v98
    %101 = vst.msk [vmem:[#allocation2 + $0x8] sm:$0x1] %vm40, %v86
    %s102 = sld [smem:[#allocation3 + $0x5]]
    %s103 = scalar_lea.vmem %s1, %s102
    %v104 = vld [vmem:[%s103] sm:$0x1]
    %105 = vst.msk [vmem:[#allocation2 + $0x14] sm:$0x1] %vm40, %v104
    %107 = vrot.lane.b32.xlu0 %v104, 32
    %v108 = vpop.permute.xlu0 %107
    %110 = vst.msk [vmem:[#allocation2 + $0x4] sm:$0x1] %vm50, %v108
    %111 = vrot.lane.b32.xlu0 %v104, 64
    %v112 = vpop.permute.xlu0 %111
    %114 = vst.msk [vmem:[#allocation2 + $0x12] sm:$0x1] %vm64, %v112
    %115 = vrot.lane.b32.xlu0 %v104, 96
    %v116 = vpop.permute.xlu0 %115
    %118 = vst.msk [vmem:[#allocation2 + $0x2] sm:$0x1] %vm82, %v116
    %119 = vst.msk [vmem:[#allocation2 + $0x18] sm:$0x1] %vm40, %v104
    %s120 = sld [smem:[#allocation3 + $0x6]]
    %s121 = scalar_lea.vmem %s1, %s120
    %v122 = vld [vmem:[%s121] sm:$0x1]
    %123 = vst.msk [vmem:[#allocation2 + $0x6] sm:$0x1] %vm40, %v122
    %125 = vrot.lane.b32.xlu0 %v122, 32
    %v126 = vpop.permute.xlu0 %125
    %128 = vst.msk [vmem:[#allocation2 + $0x14] sm:$0x1] %vm50, %v126
    %129 = vrot.lane.b32.xlu0 %v122, 64
    %v130 = vpop.permute.xlu0 %129
    %132 = vst.msk [vmem:[#allocation2 + $0x4] sm:$0x1] %vm64, %v130
    %133 = vrot.lane.b32.xlu0 %v122, 96
    %v134 = vpop.permute.xlu0 %133
    %136 = vst.msk [vmem:[#allocation2 + $0x12] sm:$0x1] %vm82, %v134
    %137 = vst.msk [vmem:[#allocation2 + $0xa] sm:$0x1] %vm40, %v122
    %s138 = sld [smem:[#allocation3 + $0x7]]
    %s139 = scalar_lea.vmem %s1, %s138
    %v140 = vld [vmem:[%s139] sm:$0x1]
    %141 = vst.msk [vmem:[#allocation2 + $0x16] sm:$0x1] %vm40, %v140
    %143 = vrot.lane.b32.xlu0 %v140, 32
    %v144 = vpop.permute.xlu0 %143
    %146 = vst.msk [vmem:[#allocation2 + $0x6] sm:$0x1] %vm50, %v144
    %147 = vrot.lane.b32.xlu0 %v140, 64
    %v148 = vpop.permute.xlu0 %147
    %150 = vst.msk [vmem:[#allocation2 + $0x14] sm:$0x1] %vm64, %v148
    %151 = vrot.lane.b32.xlu0 %v140, 96
    %v152 = vpop.permute.xlu0 %151
    %154 = vst.msk [vmem:[#allocation2 + $0x4] sm:$0x1] %vm82, %v152
    %155 = vst.msk [vmem:[#allocation2 + $0x1a] sm:$0x1] %vm40, %v140
    %s156 = sld [smem:[#allocation3 + $0x8]]
    %s157 = scalar_lea.vmem %s1, %s156
    %v158 = vld [vmem:[%s157] sm:$0x1]
    %160 = vrot.lane.b32.xlu0 %v158, 32
    %v161 = vpop.permute.xlu0 %160
    %163 = vst.msk [vmem:[#allocation2 + $0x16] sm:$0x1] %vm50, %v161
    %164 = vrot.lane.b32.xlu0 %v158, 64
    %v165 = vpop.permute.xlu0 %164
    %167 = vst.msk [vmem:[#allocation2 + $0x6] sm:$0x1] %vm64, %v165
    %168 = vrot.lane.b32.xlu0 %v158, 96
    %v169 = vpop.permute.xlu0 %168
    %171 = vst.msk [vmem:[#allocation2 + $0x14] sm:$0x1] %vm82, %v169
    %172 = vst.msk [vmem:[#allocation2 + $0xc] sm:$0x1] %vm40, %v158
    %s173 = sld [smem:[#allocation3 + $0x9]]
    %s174 = scalar_lea.vmem %s1, %s173
    %v175 = vld [vmem:[%s174] sm:$0x1]
    %177 = vrot.lane.b32.xlu0 %v175, 64
    %v178 = vpop.permute.xlu0 %177
    %180 = vst.msk [vmem:[#allocation2 + $0x16] sm:$0x1] %vm64, %v178
    %181 = vrot.lane.b32.xlu0 %v175, 96
    %v182 = vpop.permute.xlu0 %181
    %184 = vst.msk [vmem:[#allocation2 + $0x6] sm:$0x1] %vm82, %v182
    %185 = vst.msk [vmem:[#allocation2 + $0x1c] sm:$0x1] %vm40, %v175
    %s186 = sld [smem:[#allocation3 + $0xa]]
    %s187 = scalar_lea.vmem %s1, %s186
    %v188 = vld [vmem:[%s187] sm:$0x1]
    %190 = vrot.lane.b32.xlu0 %v188, 96
    %v191 = vpop.permute.xlu0 %190
    %193 = vst.msk [vmem:[#allocation2 + $0x16] sm:$0x1] %vm82, %v191
    %194 = vst.msk [vmem:[#allocation2 + $0xe] sm:$0x1] %vm40, %v188
    %s195 = sld [smem:[#allocation3 + $0xb]]
    %s196 = scalar_lea.vmem %s1, %s195
    %v197 = vld [vmem:[%s196] sm:$0x1]
    %198 = vst.msk [vmem:[#allocation2 + $0x1e] sm:$0x1] %vm40, %v197
    %s199 = sld [smem:[#allocation3 + $0x80]]
    %s200 = scalar_lea.vmem %s1, %s199
    %v201 = vld [vmem:[%s200] sm:$0x1]
    %202 = vst.msk [vmem:[#allocation2 + $0x1] sm:$0x1] %vm40, %v201
    %s203 = sld [smem:[#allocation3 + $0x81]]
    %s204 = scalar_lea.vmem %s1, %s203
    %v205 = vld [vmem:[%s204] sm:$0x1]
    %206 = vst.msk [vmem:[#allocation2 + $0x11] sm:$0x1] %vm40, %v205
    %208 = vrot.lane.b32.xlu0 %v205, 32
    %v209 = vpop.permute.xlu0 %208
    %211 = vst.msk [vmem:[#allocation2 + $0x1] sm:$0x1] %vm50, %v209
    %s212 = sld [smem:[#allocation3 + $0x82]]
    %s213 = scalar_lea.vmem %s1, %s212
    %v214 = vld [vmem:[%s213] sm:$0x1]
    %215 = vst.msk [vmem:[#allocation2 + $0x3] sm:$0x1] %vm40, %v214
    %217 = vrot.lane.b32.xlu0 %v214, 32
    %v218 = vpop.permute.xlu0 %217
    %220 = vst.msk [vmem:[#allocation2 + $0x11] sm:$0x1] %vm50, %v218
    %221 = vrot.lane.b32.xlu0 %v214, 64
    %v222 = vpop.permute.xlu0 %221
    %224 = vst.msk [vmem:[#allocation2 + $0x1] sm:$0x1] %vm64, %v222
    %s225 = sld [smem:[#allocation3 + $0x83]]
    %s226 = scalar_lea.vmem %s1, %s225
    %v227 = vld [vmem:[%s226] sm:$0x1]
    %228 = vst.msk [vmem:[#allocation2 + $0x13] sm:$0x1] %vm40, %v227
    %230 = vrot.lane.b32.xlu0 %v227, 32
    %v231 = vpop.permute.xlu0 %230
    %233 = vst.msk [vmem:[#allocation2 + $0x3] sm:$0x1] %vm50, %v231
    %234 = vrot.lane.b32.xlu0 %v227, 64
    %v235 = vpop.permute.xlu0 %234
    %237 = vst.msk [vmem:[#allocation2 + $0x11] sm:$0x1] %vm64, %v235
    %238 = vrot.lane.b32.xlu0 %v227, 96
    %v239 = vpop.permute.xlu0 %238
    %241 = vst.msk [vmem:[#allocation2 + $0x1] sm:$0x1] %vm82, %v239
    %s242 = sld [smem:[#allocation3 + $0x84]]
    %s243 = scalar_lea.vmem %s1, %s242
    %v244 = vld [vmem:[%s243] sm:$0x1]
    %245 = vst.msk [vmem:[#allocation2 + $0x5] sm:$0x1] %vm40, %v244
    %247 = vrot.lane.b32.xlu0 %v244, 32
    %v248 = vpop.permute.xlu0 %247
    %250 = vst.msk [vmem:[#allocation2 + $0x13] sm:$0x1] %vm50, %v248
    %251 = vrot.lane.b32.xlu0 %v244, 64
    %v252 = vpop.permute.xlu0 %251
    %254 = vst.msk [vmem:[#allocation2 + $0x3] sm:$0x1] %vm64, %v252
    %255 = vrot.lane.b32.xlu0 %v244, 96
    %v256 = vpop.permute.xlu0 %255
    %258 = vst.msk [vmem:[#allocation2 + $0x11] sm:$0x1] %vm82, %v256
    %259 = vst.msk [vmem:[#allocation2 + $0x9] sm:$0x1] %vm40, %v244
    %s260 = sld [smem:[#allocation3 + $0x85]]
    %s261 = scalar_lea.vmem %s1, %s260
    %v262 = vld [vmem:[%s261] sm:$0x1]
    %263 = vst.msk [vmem:[#allocation2 + $0x15] sm:$0x1] %vm40, %v262
    %265 = vrot.lane.b32.xlu0 %v262, 32
    %v266 = vpop.permute.xlu0 %265
    %268 = vst.msk [vmem:[#allocation2 + $0x5] sm:$0x1] %vm50, %v266
    %269 = vrot.lane.b32.xlu0 %v262, 64
    %v270 = vpop.permute.xlu0 %269
    %272 = vst.msk [vmem:[#allocation2 + $0x13] sm:$0x1] %vm64, %v270
    %273 = vrot.lane.b32.xlu0 %v262, 96
    %v274 = vpop.permute.xlu0 %273
    %276 = vst.msk [vmem:[#allocation2 + $0x3] sm:$0x1] %vm82, %v274
    %277 = vst.msk [vmem:[#allocation2 + $0x19] sm:$0x1] %vm40, %v262
    %s278 = sld [smem:[#allocation3 + $0x86]]
    %s279 = scalar_lea.vmem %s1, %s278
    %v280 = vld [vmem:[%s279] sm:$0x1]
    %281 = vst.msk [vmem:[#allocation2 + $0x7] sm:$0x1] %vm40, %v280
    %283 = vrot.lane.b32.xlu0 %v280, 32
    %v284 = vpop.permute.xlu0 %283
    %286 = vst.msk [vmem:[#allocation2 + $0x15] sm:$0x1] %vm50, %v284
    %287 = vrot.lane.b32.xlu0 %v280, 64
    %v288 = vpop.permute.xlu0 %287
    %290 = vst.msk [vmem:[#allocation2 + $0x5] sm:$0x1] %vm64, %v288
    %291 = vrot.lane.b32.xlu0 %v280, 96
    %v292 = vpop.permute.xlu0 %291
    %294 = vst.msk [vmem:[#allocation2 + $0x13] sm:$0x1] %vm82, %v292
    %295 = vst.msk [vmem:[#allocation2 + $0xb] sm:$0x1] %vm40, %v280
    %s296 = sld [smem:[#allocation3 + $0x87]]
    %s297 = scalar_lea.vmem %s1, %s296
    %v298 = vld [vmem:[%s297] sm:$0x1]
    %299 = vst.msk [vmem:[#allocation2 + $0x17] sm:$0x1] %vm40, %v298
    %301 = vrot.lane.b32.xlu0 %v298, 32
    %v302 = vpop.permute.xlu0 %301
    %304 = vst.msk [vmem:[#allocation2 + $0x7] sm:$0x1] %vm50, %v302
    %305 = vrot.lane.b32.xlu0 %v298, 64
    %v306 = vpop.permute.xlu0 %305
    %308 = vst.msk [vmem:[#allocation2 + $0x15] sm:$0x1] %vm64, %v306
    %309 = vrot.lane.b32.xlu0 %v298, 96
    %v310 = vpop.permute.xlu0 %309
    %312 = vst.msk [vmem:[#allocation2 + $0x5] sm:$0x1] %vm82, %v310
    %313 = vst.msk [vmem:[#allocation2 + $0x1b] sm:$0x1] %vm40, %v298
    %s314 = sld [smem:[#allocation3 + $0x88]]
    %s315 = scalar_lea.vmem %s1, %s314
    %v316 = vld [vmem:[%s315] sm:$0x1]
    %318 = vrot.lane.b32.xlu0 %v316, 32
    %v319 = vpop.permute.xlu0 %318
    %321 = vst.msk [vmem:[#allocation2 + $0x17] sm:$0x1] %vm50, %v319
    %322 = vrot.lane.b32.xlu0 %v316, 64
    %v323 = vpop.permute.xlu0 %322
    %325 = vst.msk [vmem:[#allocation2 + $0x7] sm:$0x1] %vm64, %v323
    %326 = vrot.lane.b32.xlu0 %v316, 96
    %v327 = vpop.permute.xlu0 %326
    %329 = vst.msk [vmem:[#allocation2 + $0x15] sm:$0x1] %vm82, %v327
    %330 = vst.msk [vmem:[#allocation2 + $0xd] sm:$0x1] %vm40, %v316
    %s331 = sld [smem:[#allocation3 + $0x89]]
    %s332 = scalar_lea.vmem %s1, %s331
    %v333 = vld [vmem:[%s332] sm:$0x1]
    %335 = vrot.lane.b32.xlu0 %v333, 64
    %v336 = vpop.permute.xlu0 %335
    %338 = vst.msk [vmem:[#allocation2 + $0x17] sm:$0x1] %vm64, %v336
    %339 = vrot.lane.b32.xlu0 %v333, 96
    %v340 = vpop.permute.xlu0 %339
    %342 = vst.msk [vmem:[#allocation2 + $0x7] sm:$0x1] %vm82, %v340
    %343 = vst.msk [vmem:[#allocation2 + $0x1d] sm:$0x1] %vm40, %v333
    %s344 = sld [smem:[#allocation3 + $0x8a]]
    %s345 = scalar_lea.vmem %s1, %s344
    %v346 = vld [vmem:[%s345] sm:$0x1]
    %348 = vrot.lane.b32.xlu0 %v346, 96
    %v349 = vpop.permute.xlu0 %348
    %351 = vst.msk [vmem:[#allocation2 + $0x17] sm:$0x1] %vm82, %v349
    %352 = vst.msk [vmem:[#allocation2 + $0xf] sm:$0x1] %vm40, %v346
    %s353 = sld [smem:[#allocation3 + $0x8b]]
    %s354 = scalar_lea.vmem %s1, %s353
    %v355 = vld [vmem:[%s354] sm:$0x1]
    %356 = vst.msk [vmem:[#allocation2 + $0x1f] sm:$0x1] %vm40, %v355
    %v357 = vld [vmem:[#allocation2] sm:$0xff]
    %v358 = vld [vmem:[#allocation2 + $0x8] sm:$0xff]
    %v359 = vld [vmem:[#allocation2 + $0x10] sm:$0xff]
    %v360 = vld [vmem:[#allocation2 + $0x18] sm:$0xff]
    %v361 = vld [vmem:[%s2] sm:$0xff]
    %v362 = vld [vmem:[%s2 + $0x8] sm:$0xff]
    %v363 = vld [vmem:[%s2 + $0x10] sm:$0xff]
    %v364 = vld [vmem:[%s2 + $0x18] sm:$0xff]
    %v365 = vld [vmem:[%s2 + $0x20] sm:$0xff]
    %v366 = vld [vmem:[%s2 + $0x28] sm:$0xff]
    %v367 = vld [vmem:[%s2 + $0x30] sm:$0xff]
    %v368 = vld [vmem:[%s2 + $0x38] sm:$0xff]
    %v369 = vld [vmem:[%s2 + $0x40] sm:$0xff]
    %v370 = vld [vmem:[%s2 + $0x48] sm:$0xff]
    %v371 = vld [vmem:[%s2 + $0x50] sm:$0xff]
    %v372 = vld [vmem:[%s2 + $0x58] sm:$0xff]
    %v373 = vld [vmem:[%s2 + $0x60] sm:$0xff]
    %v374 = vld [vmem:[%s2 + $0x68] sm:$0xff]
    %v375 = vld [vmem:[%s2 + $0x70] sm:$0xff]
    %v376 = vld [vmem:[%s2 + $0x78] sm:$0xff]
    %v377 = vld [vmem:[%s2 + $0x80] sm:$0xff]
    %v378 = vld [vmem:[%s2 + $0x88] sm:$0xff]
    %v379 = vld [vmem:[%s2 + $0x90] sm:$0xff]
    %v380 = vld [vmem:[%s2 + $0x98] sm:$0xff]
    %vm381 = vcmask 261120
    %v383 = vsel %vm381, %v358, 0
    %v386 = vsel %vm381, %v360, 0
    %388 = vmatprep.subr.mxu0 0.0
    %389 = vmatpush1.msra.mxu0 %v361
    %390 = vmatprep.subr.mxu0 0.0
    %391 = vmatpush1.msra.mxu0 %v362
    %392 = vmatprep.subr.mxu0 0.0
    %393 = vmatpush1.msra.mxu0 %v363
    %394 = vmatprep.subr.mxu0 0.0
    %395 = vmatpush1.msra.mxu0 %v364
    %396 = vmatprep.subr.mxu0 0.0
    %397 = vmatpush1.msra.mxu0 %v365
    %398 = vmatprep.subr.mxu0 0.0
    %399 = vmatpush1.msra.mxu0 %v366
    %400 = vmatprep.subr.mxu0 0.0
    %401 = vmatpush1.msra.mxu0 %v367
    %402 = vmatprep.subr.mxu0 0.0
    %403 = vmatpush1.msra.mxu0 %v368
    %404 = vmatprep.subr.mxu0 0.0
    %405 = vmatpush1.msra.mxu0 %v369
    %406 = vmatprep.subr.mxu0 0.0
    %407 = vmatpush1.msra.mxu0 %v370
    %408 = vmatprep.subr.mxu0 0.0
    %409 = vmatpush1.msra.mxu0 %v371
    %410 = vmatprep.subr.mxu0 0.0
    %411 = vmatpush1.msra.mxu0 %v372
    %412 = vmatprep.subr.mxu0 0.0
    %413 = vmatpush1.msra.mxu0 %v373
    %414 = vmatprep.subr.mxu0 0.0
    %415 = vmatpush1.msra.mxu0 %v374
    %416 = vmatprep.subr.mxu0 0.0
    %417 = vmatpush1.msra.mxu0 %v375
    %418 = vmatprep.subr.mxu0 0.0
    %419 = vmatpush1.msra.mxu0 %v376
    %420 = vmatprep.subr.mxu0 0.0
    %421 = vmatpush1.msra.mxu0 %v377
    %422 = vmatprep.subr.mxu0 0.0
    %423 = vmatpush1.msra.mxu0 %v378
    %424 = vmatprep.subr.mxu0 0.0
    %425 = vmatpush1.msra.mxu0 %v379
    %426 = vmatprep.subr.mxu0 0.0
    %427 = vmatpush1.msra.mxu0 %v380
    %428 = vmatprep.subr.mxu0 0.0
    %429 = vmatpush1.msra.mxu0 0.0
    %430 = vmatprep.subr.mxu0 0.0
    %431 = vmatpush1.msra.mxu0 0.0
    %432 = vmatprep.subr.mxu0 0.0
    %433 = vmatpush1.msra.mxu0 0.0
    %434 = vmatprep.subr.mxu0 0.0
    %435 = vmatpush1.msra.mxu0 0.0
    %436 = vmatprep.subr.mxu0 0.0
    %437 = vmatpush1.msra.mxu0 0.0
    %438 = vmatprep.subr.mxu0 0.0
    %439 = vmatpush1.msra.mxu0 0.0
    %440 = vmatprep.subr.mxu0 0.0
    %441 = vmatpush1.msra.mxu0 0.0
    %442 = vmatprep.subr.mxu0 0.0
    %443 = vmatpush1.msra.mxu0 0.0
    %444 = vmatprep.subr.mxu0 0.0
    %445 = vmatpush1.msra.mxu0 0.0
    %446 = vmatprep.subr.mxu0 0.0
    %447 = vmatpush1.msra.mxu0 0.0
    %448 = vmatprep.subr.mxu0 0.0
    %449 = vmatpush1.msra.mxu0 0.0
    %450 = vmatprep.subr.mxu0 0.0
    %451 = vmatpush1.msra.mxu0 0.0
    %452 = vmatprep.mubr.f32.mxu0 %v383
    %453 = vmatmul.mubr.f32.gmra.mrb[0].mxu0 %v357
    %v454 = vpop.f32.mrb[0].mxu0
    %v455 = vadd.f32 0.0, %v454
    %v456 = vpop.f32.mrb[0].mxu0
    %457 = vmatprep.mubr.f32.mxu0 %v386
    %458 = vmatmul.mubr.f32.gmra.mrb[0].mxu0 %v359
    %v459 = vpop.f32.mrb[0].mxu0
    %v460 = vadd.f32 0.0, %v459
    %v461 = vpop.f32.mrb[0].mxu0
    %462 = vdwg.mxu0
    %v463 = vmax.f32 %v455, %v460
    %v464 = vld [vmem:[%s3] sm:$0x1]
    %v466 = vlaneseq
    %v467 = vshrl.u32 %v466, 7
    %v468 = vsub.s32 0, %v467
    %v469 = vrot.slane %v464, %v468
    %v471 = vadd.f32 %v463, %v469
    %v472 = vmax.f32 %v471, 0.0
    %v473 = vld [vmem:[%s4] sm:$0xff]
    %v474 = vld [vmem:[%s4 + $0x8] sm:$0x3]
    %v475 = vld [vmem:[%s4 + $0xa] sm:$0xff]
    %v476 = vld [vmem:[%s4 + $0x12] sm:$0x3]
    %v478 = vrot.slane %v472, 2
    %vm479 = vcmask 80896
    %v480 = vsel %vm479, %v478, 0
    %vm482 = vcmask 1041408
    %v484 = vsel %vm482, %v476, 0
    %486 = vmatprep.subr.mxu0 0.0
    %487 = vmatpush1.msra.mxu0 %v475
    %488 = vmatprep.subr.mxu0 0.0
    %489 = vmatpush1.msra.mxu0 %v484
    %490 = vmatprep.subr.mxu0 0.0
    %491 = vmatpush1.msra.mxu0 0.0
    %492 = vmatprep.subr.mxu0 0.0
    %493 = vmatpush1.msra.mxu0 0.0
    %494 = vmatprep.subr.mxu0 0.0
    %495 = vmatpush1.msra.mxu0 0.0
    %496 = vmatprep.subr.mxu0 0.0
    %497 = vmatpush1.msra.mxu0 0.0
    %498 = vmatprep.subr.mxu0 0.0
    %499 = vmatpush1.msra.mxu0 0.0
    %500 = vmatprep.subr.mxu0 0.0
    %501 = vmatpush1.msra.mxu0 0.0
    %502 = vmatprep.subr.mxu0 0.0
    %503 = vmatpush1.msra.mxu0 0.0
    %504 = vmatprep.subr.mxu0 0.0
    %505 = vmatpush1.msra.mxu0 0.0
    %506 = vmatprep.subr.mxu0 0.0
    %507 = vmatpush1.msra.mxu0 0.0
    %508 = vmatprep.subr.mxu0 0.0
    %509 = vmatpush1.msra.mxu0 0.0
    %510 = vmatprep.subr.mxu0 0.0
    %511 = vmatpush1.msra.mxu0 0.0
    %512 = vmatprep.subr.mxu0 0.0
    %513 = vmatpush1.msra.mxu0 0.0
    %514 = vmatprep.subr.mxu0 0.0
    %515 = vmatpush1.msra.mxu0 0.0
    %516 = vmatprep.subr.mxu0 0.0
    %517 = vmatpush1.msra.mxu0 0.0
    %518 = vmatprep.subr.mxu0 0.0
    %519 = vmatpush1.msra.mxu0 0.0
    %520 = vmatprep.subr.mxu0 0.0
    %521 = vmatpush1.msra.mxu0 0.0
    %522 = vmatprep.subr.mxu0 0.0
    %523 = vmatpush1.msra.mxu0 0.0
    %524 = vmatprep.subr.mxu0 0.0
    %525 = vmatpush1.msra.mxu0 0.0
    %526 = vmatprep.subr.mxu0 0.0
    %527 = vmatpush1.msra.mxu0 0.0
    %528 = vmatprep.subr.mxu0 0.0
    %529 = vmatpush1.msra.mxu0 0.0
    %530 = vmatprep.subr.mxu0 0.0
    %531 = vmatpush1.msra.mxu0 0.0
    %532 = vmatprep.subr.mxu0 0.0
    %533 = vmatpush1.msra.mxu0 0.0
    %534 = vmatprep.subr.mxu0 0.0
    %535 = vmatpush1.msra.mxu0 0.0
    %536 = vmatprep.subr.mxu0 0.0
    %537 = vmatpush1.msra.mxu0 0.0
    %538 = vmatprep.subr.mxu0 0.0
    %539 = vmatpush1.msra.mxu0 0.0
    %540 = vmatprep.subr.mxu0 0.0
    %541 = vmatpush1.msra.mxu0 0.0
    %542 = vmatprep.subr.mxu0 0.0
    %543 = vmatpush1.msra.mxu0 0.0
    %544 = vmatprep.subr.mxu0 0.0
    %545 = vmatpush1.msra.mxu0 0.0
    %546 = vmatprep.subr.mxu0 0.0
    %547 = vmatpush1.msra.mxu0 0.0
    %548 = vmatprep.subr.mxu0 0.0
    %549 = vmatpush1.msra.mxu0 0.0
    %550 = vmatprep.mubr.f32.mxu0 0.0
    %551 = vmatmul.mubr.f32.gmra.mrb[0].mxu0 %v480
    %v552 = vpop.f32.mrb[0].mxu0
    %v553 = vadd.f32 0.0, %v552
    %v554 = vpop.f32.mrb[0].mxu0
    %555 = vdwg.mxu0
    %v556 = vsel %vm479, %v472, 0
    %v559 = vsel %vm482, %v474, 0
    %561 = vmatprep.subr.mxu0 0.0
    %562 = vmatpush1.msra.mxu0 %v473
    %563 = vmatprep.subr.mxu0 0.0
    %564 = vmatpush1.msra.mxu0 %v559
    %565 = vmatprep.subr.mxu0 0.0
    %566 = vmatpush1.msra.mxu0 0.0
    %567 = vmatprep.subr.mxu0 0.0
    %568 = vmatpush1.msra.mxu0 0.0
    %569 = vmatprep.subr.mxu0 0.0
    %570 = vmatpush1.msra.mxu0 0.0
    %571 = vmatprep.subr.mxu0 0.0
    %572 = vmatpush1.msra.mxu0 0.0
    %573 = vmatprep.subr.mxu0 0.0
    %574 = vmatpush1.msra.mxu0 0.0
    %575 = vmatprep.subr.mxu0 0.0
    %576 = vmatpush1.msra.mxu0 0.0
    %577 = vmatprep.subr.mxu0 0.0
    %578 = vmatpush1.msra.mxu0 0.0
    %579 = vmatprep.subr.mxu0 0.0
    %580 = vmatpush1.msra.mxu0 0.0
    %581 = vmatprep.subr.mxu0 0.0
    %582 = vmatpush1.msra.mxu0 0.0
    %583 = vmatprep.subr.mxu0 0.0
    %584 = vmatpush1.msra.mxu0 0.0
    %585 = vmatprep.subr.mxu0 0.0
    %586 = vmatpush1.msra.mxu0 0.0
    %587 = vmatprep.subr.mxu0 0.0
    %588 = vmatpush1.msra.mxu0 0.0
    %589 = vmatprep.subr.mxu0 0.0
    %590 = vmatpush1.msra.mxu0 0.0
    %591 = vmatprep.subr.mxu0 0.0
    %592 = vmatpush1.msra.mxu0 0.0
    %593 = vmatprep.subr.mxu0 0.0
    %594 = vmatpush1.msra.mxu0 0.0
    %595 = vmatprep.subr.mxu0 0.0
    %596 = vmatpush1.msra.mxu0 0.0
    %597 = vmatprep.subr.mxu0 0.0
    %598 = vmatpush1.msra.mxu0 0.0
    %599 = vmatprep.subr.mxu0 0.0
    %600 = vmatpush1.msra.mxu0 0.0
    %601 = vmatprep.subr.mxu0 0.0
    %602 = vmatpush1.msra.mxu0 0.0
    %603 = vmatprep.subr.mxu0 0.0
    %604 = vmatpush1.msra.mxu0 0.0
    %605 = vmatprep.subr.mxu0 0.0
    %606 = vmatpush1.msra.mxu0 0.0
    %607 = vmatprep.subr.mxu0 0.0
    %608 = vmatpush1.msra.mxu0 0.0
    %609 = vmatprep.subr.mxu0 0.0
    %610 = vmatpush1.msra.mxu0 0.0
    %611 = vmatprep.subr.mxu0 0.0
    %612 = vmatpush1.msra.mxu0 0.0
    %613 = vmatprep.subr.mxu0 0.0
    %614 = vmatpush1.msra.mxu0 0.0
    %615 = vmatprep.subr.mxu0 0.0
    %616 = vmatpush1.msra.mxu0 0.0
    %617 = vmatprep.subr.mxu0 0.0
    %618 = vmatpush1.msra.mxu0 0.0
    %619 = vmatprep.subr.mxu0 0.0
    %620 = vmatpush1.msra.mxu0 0.0
    %621 = vmatprep.subr.mxu0 0.0
    %622 = vmatpush1.msra.mxu0 0.0
    %623 = vmatprep.subr.mxu0 0.0
    %624 = vmatpush1.msra.mxu0 0.0
    %625 = vmatprep.mubr.f32.mxu0 0.0
    %626 = vmatmul.mubr.f32.gmra.mrb[0].mxu0 %v556
    %v627 = vpop.f32.mrb[0].mxu0
    %v628 = vadd.f32 %v553, %v627
    %v629 = vpop.f32.mrb[0].mxu0
    %630 = vdwg.mxu0
    %v631 = vld [vmem:[%s4 + $0x14] sm:$0xff]
    %v632 = vld [vmem:[%s4 + $0x1c] sm:$0x3]
    %v633 = vrot.slane %v472, 4
    %v634 = vsel %vm479, %v633, 0
    %v637 = vsel %vm482, %v632, 0
    %639 = vmatprep.subr.mxu0 0.0
    %640 = vmatpush1.msra.mxu0 %v631
    %641 = vmatprep.subr.mxu0 0.0
    %642 = vmatpush1.msra.mxu0 %v637
    %643 = vmatprep.subr.mxu0 0.0
    %644 = vmatpush1.msra.mxu0 0.0
    %645 = vmatprep.subr.mxu0 0.0
    %646 = vmatpush1.msra.mxu0 0.0
    %647 = vmatprep.subr.mxu0 0.0
    %648 = vmatpush1.msra.mxu0 0.0
    %649 = vmatprep.subr.mxu0 0.0
    %650 = vmatpush1.msra.mxu0 0.0
    %651 = vmatprep.subr.mxu0 0.0
    %652 = vmatpush1.msra.mxu0 0.0
    %653 = vmatprep.subr.mxu0 0.0
    %654 = vmatpush1.msra.mxu0 0.0
    %655 = vmatprep.subr.mxu0 0.0
    %656 = vmatpush1.msra.mxu0 0.0
    %657 = vmatprep.subr.mxu0 0.0
    %658 = vmatpush1.msra.mxu0 0.0
    %659 = vmatprep.subr.mxu0 0.0
    %660 = vmatpush1.msra.mxu0 0.0
    %661 = vmatprep.subr.mxu0 0.0
    %662 = vmatpush1.msra.mxu0 0.0
    %663 = vmatprep.subr.mxu0 0.0
    %664 = vmatpush1.msra.mxu0 0.0
    %665 = vmatprep.subr.mxu0 0.0
    %666 = vmatpush1.msra.mxu0 0.0
    %667 = vmatprep.subr.mxu0 0.0
    %668 = vmatpush1.msra.mxu0 0.0
    %669 = vmatprep.subr.mxu0 0.0
    %670 = vmatpush1.msra.mxu0 0.0
    %671 = vmatprep.subr.mxu0 0.0
    %672 = vmatpush1.msra.mxu0 0.0
    %673 = vmatprep.subr.mxu0 0.0
    %674 = vmatpush1.msra.mxu0 0.0
    %675 = vmatprep.subr.mxu0 0.0
    %676 = vmatpush1.msra.mxu0 0.0
    %677 = vmatprep.subr.mxu0 0.0
    %678 = vmatpush1.msra.mxu0 0.0
    %679 = vmatprep.subr.mxu0 0.0
    %680 = vmatpush1.msra.mxu0 0.0
    %681 = vmatprep.subr.mxu0 0.0
    %682 = vmatpush1.msra.mxu0 0.0
    %683 = vmatprep.subr.mxu0 0.0
    %684 = vmatpush1.msra.mxu0 0.0
    %685 = vmatprep.subr.mxu0 0.0
    %686 = vmatpush1.msra.mxu0 0.0
    %687 = vmatprep.subr.mxu0 0.0
    %688 = vmatpush1.msra.mxu0 0.0
    %689 = vmatprep.subr.mxu0 0.0
    %690 = vmatpush1.msra.mxu0 0.0
    %691 = vmatprep.subr.mxu0 0.0
    %692 = vmatpush1.msra.mxu0 0.0
    %693 = vmatprep.subr.mxu0 0.0
    %694 = vmatpush1.msra.mxu0 0.0
    %695 = vmatprep.subr.mxu0 0.0
    %696 = vmatpush1.msra.mxu0 0.0
    %697 = vmatprep.subr.mxu0 0.0
    %698 = vmatpush1.msra.mxu0 0.0
    %699 = vmatprep.subr.mxu0 0.0
    %700 = vmatpush1.msra.mxu0 0.0
    %701 = vmatprep.subr.mxu0 0.0
    %702 = vmatpush1.msra.mxu0 0.0
    %703 = vmatprep.mubr.f32.mxu0 0.0
    %704 = vmatmul.mubr.f32.gmra.mrb[0].mxu0 %v634
    %v705 = vpop.f32.mrb[0].mxu0
    %v706 = vadd.f32 0.0, %v705
    %v707 = vpop.f32.mrb[0].mxu0
    %708 = vdwg.mxu0
    %v709 = vadd.f32 %v628, %v706
    %v710 = vld [vmem:[%s4 + $0x1e] sm:$0xff]
    %v711 = vld [vmem:[%s4 + $0x26] sm:$0x3]
    %v712 = vrot.slane %v472, 6
    %v713 = vsel %vm479, %v712, 0
    %v716 = vsel %vm482, %v711, 0
    %718 = vmatprep.subr.mxu0 0.0
    %719 = vmatpush1.msra.mxu0 %v710
    %720 = vmatprep.subr.mxu0 0.0
    %721 = vmatpush1.msra.mxu0 %v716
    %722 = vmatprep.subr.mxu0 0.0
    %723 = vmatpush1.msra.mxu0 0.0
    %724 = vmatprep.subr.mxu0 0.0
    %725 = vmatpush1.msra.mxu0 0.0
    %726 = vmatprep.subr.mxu0 0.0
    %727 = vmatpush1.msra.mxu0 0.0
    %728 = vmatprep.subr.mxu0 0.0
    %729 = vmatpush1.msra.mxu0 0.0
    %730 = vmatprep.subr.mxu0 0.0
    %731 = vmatpush1.msra.mxu0 0.0
    %732 = vmatprep.subr.mxu0 0.0
    %733 = vmatpush1.msra.mxu0 0.0
    %734 = vmatprep.subr.mxu0 0.0
    %735 = vmatpush1.msra.mxu0 0.0
    %736 = vmatprep.subr.mxu0 0.0
    %737 = vmatpush1.msra.mxu0 0.0
    %738 = vmatprep.subr.mxu0 0.0
    %739 = vmatpush1.msra.mxu0 0.0
    %740 = vmatprep.subr.mxu0 0.0
    %741 = vmatpush1.msra.mxu0 0.0
    %742 = vmatprep.subr.mxu0 0.0
    %743 = vmatpush1.msra.mxu0 0.0
    %744 = vmatprep.subr.mxu0 0.0
    %745 = vmatpush1.msra.mxu0 0.0
    %746 = vmatprep.subr.mxu0 0.0
    %747 = vmatpush1.msra.mxu0 0.0
    %748 = vmatprep.subr.mxu0 0.0
    %749 = vmatpush1.msra.mxu0 0.0
    %750 = vmatprep.subr.mxu0 0.0
    %751 = vmatpush1.msra.mxu0 0.0
    %752 = vmatprep.subr.mxu0 0.0
    %753 = vmatpush1.msra.mxu0 0.0
    %754 = vmatprep.subr.mxu0 0.0
    %755 = vmatpush1.msra.mxu0 0.0
    %756 = vmatprep.subr.mxu0 0.0
    %757 = vmatpush1.msra.mxu0 0.0
    %758 = vmatprep.subr.mxu0 0.0
    %759 = vmatpush1.msra.mxu0 0.0
    %760 = vmatprep.subr.mxu0 0.0
    %761 = vmatpush1.msra.mxu0 0.0
    %762 = vmatprep.subr.mxu0 0.0
    %763 = vmatpush1.msra.mxu0 0.0
    %764 = vmatprep.subr.mxu0 0.0
    %765 = vmatpush1.msra.mxu0 0.0
    %766 = vmatprep.subr.mxu0 0.0
    %767 = vmatpush1.msra.mxu0 0.0
    %768 = vmatprep.subr.mxu0 0.0
    %769 = vmatpush1.msra.mxu0 0.0
    %770 = vmatprep.subr.mxu0 0.0
    %771 = vmatpush1.msra.mxu0 0.0
    %772 = vmatprep.subr.mxu0 0.0
    %773 = vmatpush1.msra.mxu0 0.0
    %774 = vmatprep.subr.mxu0 0.0
    %775 = vmatpush1.msra.mxu0 0.0
    %776 = vmatprep.subr.mxu0 0.0
    %777 = vmatpush1.msra.mxu0 0.0
    %778 = vmatprep.subr.mxu0 0.0
    %779 = vmatpush1.msra.mxu0 0.0
    %780 = vmatprep.subr.mxu0 0.0
    %781 = vmatpush1.msra.mxu0 0.0
    %782 = vmatprep.mubr.f32.mxu0 0.0
    %783 = vmatmul.mubr.f32.gmra.mrb[0].mxu0 %v713
    %v784 = vpop.f32.mrb[0].mxu0
    %v785 = vadd.f32 0.0, %v784
    %v786 = vpop.f32.mrb[0].mxu0
    %787 = vdwg.mxu0
    %v788 = vadd.f32 %v709, %v785
    %v789 = vld [vmem:[%s5] sm:$0x1]
    %v791 = vlaneseq
    %v792 = vshrl.u32 %v791, 7
    %v793 = vsub.s32 0, %v792
    %v794 = vrot.slane %v789, %v793
    %v796 = vadd.f32 %v788, %v794
    %vm797 = vcmask 58368
    %v798 = vsel %vm797, %v796, -inf
    %799 = vmax.xlane.f32.xlu0 %v798
    %v800 = vpop.xlane.xlu0 %799
    %v801 = vsub.f32 %v796, %v800
    %v802 = vmul.f32 %v801, 1.442695
    %v803 = vpow.pop %v802
    %v804 = vsel %vm797, %v803, 0.0
    %805 = vadd.xlane.f32.xlu0 %v804
    %v806 = vpop.xlane.xlu0 %805
    %v807 = vlog2.pop %v806
    %v808 = vmul.f32 %v807, 0.6931472
    %v809 = vsub.f32 %v801, %v808
    %810 = vst.msk [vmem:[#allocation6] sm:$0x3] %vm797, %v809
    // Predicated region
    $region30: #{textcnn_forward.1} parent=1 // pred_check
      _
    $region31: #{textcnn_forward.1} parent=1 // pred_check_branch
      %812 = sbr.rel (0) target = $region33
    $region32: #{textcnn_forward.1} parent=1 // pred_region
      %s814 = ssub.s32 32, 32
      %815 = vsyncadd [#allocation4], %s814
      %s817 = sshll.u32 [#allocation6], 4
      %s818 = int_to_ptr.vmem [resolvable:$true] %s817
      %820 = dma.vmem_to_hbm [thread:$0]  %s818, 32, %s6, [#allocation4]
    $region33: #{textcnn_forward.1} parent=1 // pred_fallthru
      _
    // Predicated region
    $region34: #{textcnn_forward.1} parent=1 // pred_check
      _
    $region35: #{textcnn_forward.1} parent=1 // pred_check_branch
      %822 = sbr.rel (0) target = $region37
    $region36: #{textcnn_forward.1} parent=1 // pred_region
      %823 = dma.done [#allocation4], 32
    $region37: #{textcnn_forward.1} parent=1 // pred_fallthru
      _
    %824 = vsyncpa [#allocation4], 1
    %825 = vsyncpa [#allocation5], 1

</llo_original>
